<compile_context>
chip_gen: v7x
topology: tpu7x:2x2x1
jax: 0.10.0
libtpu: 0.0.40
codegen_flags: <defaults>
</compile_context>

<pallas_src>
import math

import jax
import jax.numpy as jnp
from jax import lax
from jax.experimental import pallas as pl
from jax.experimental.pallas import tpu as pltpu


# ---------------------------------------------------------------------------
# kernel
# ---------------------------------------------------------------------------
def _make_kernel(C, N, M):
    """C channels, N = H*W input pixels, M = 4*N output pixels."""

    def kernel(x_ref, d_ref, w_ref, b_ref, out_ref):
        # x_ref:   (1, C, N)   f32   input image (channels-first, flat spatial)
        # d_ref:   (9*M, N)    bf16  0/1 gather matrix (tap-major row blocks)
        # w_ref:   (C, 9*C)    bf16  conv weights, columns ordered (ky, kx, c_in)
        # b_ref:   (C, 1)      f32   conv bias
        # out_ref: (1, C, M)   f32
        xb = x_ref[0].astype(jnp.bfloat16)                      # (C, N)

        # gathered[ci, t*M + p] = value of input channel ci at the tap-t
        # neighbor of upsampled output pixel p (0 where the neighbor is padding).
        gathered = lax.dot_general(
            xb, d_ref[...],
            (((1,), (1,)), ((), ())),                            # contract over N
            preferred_element_type=jnp.float32,
        ).astype(jnp.bfloat16)                                   # (C, 9*M)

        # im2col: stack the 9 taps along the contraction (sublane) axis.
        g = jnp.concatenate(
            [gathered[:, t * M:(t + 1) * M] for t in range(9)], axis=0
        )                                                        # (9*C, M)

        # One big conv matmul: (C, 9C) @ (9C, M) with f32 accumulation.
        out = jnp.dot(w_ref[...], g, preferred_element_type=jnp.float32)  # (C, M)
        out_ref[0] = out + b_ref[...]

    return kernel


# ---------------------------------------------------------------------------
# wrapper
# ---------------------------------------------------------------------------
def _build_gather_matrix(H, W):
    """(9*4HW, HW) 0/1 matrix: row t*M + p selects the input pixel that is the
    (ky, kx) neighbor (t = ky*3 + kx) of output pixel p of the 2x nearest
    upsample, or is all-zero where the 3x3 conv reads zero padding."""
    H2, W2 = 2 * H, 2 * W
    M, N = H2 * W2, H * W
    p = jnp.arange(M)
    y = p // W2
    x = p % W2
    cols = jnp.arange(N)[None, :]
    mats = []
    for ky in range(3):
        for kx in range(3):
            yy = y + ky - 1
            xx = x + kx - 1
            valid = (yy >= 0) & (yy < H2) & (xx >= 0) & (xx < W2)
            q = (jnp.clip(yy, 0, H2 - 1) // 2) * W + (jnp.clip(xx, 0, W2 - 1) // 2)
            one_hot = (q[:, None] == cols) & valid[:, None]
            mats.append(one_hot.astype(jnp.bfloat16))
    return jnp.concatenate(mats, axis=0)                         # (9*M, N)


def up_sample(x_nchw, conv_w, conv_b):
    """x_nchw: (B, C, H, W) f32; conv_w: (C, C, 3, 3); conv_b: (C,).
    Returns (B, C, 2H, 2W) f32 = Conv3x3(pad=1)(nearest_upsample_2x(x))."""
    B, C, H, W = x_nchw.shape
    N = H * W
    M = 4 * N

    x_flat = x_nchw.reshape(B, C, N)                             # free reshape
    dstk = _build_gather_matrix(H, W)                            # (9M, N) bf16
    # w[co, ci, ky, kx] -> (co, ky, kx, ci) -> (C, 9C): col = (ky*3+kx)*C + ci
    wcat_t = jnp.transpose(conv_w, (0, 2, 3, 1)).reshape(C, 9 * C).astype(jnp.bfloat16)
    bias_col = conv_b.reshape(C, 1).astype(jnp.float32)

    kernel = _make_kernel(C, N, M)

    out = pl.pallas_call(
        kernel,
        out_shape=jax.ShapeDtypeStruct((B, C, M), jnp.float32),
        grid_spec=pltpu.PrefetchScalarGridSpec(
            num_scalar_prefetch=0,
            grid=(B,),
            in_specs=[
                pl.BlockSpec((1, C, N), lambda b: (b, 0, 0)),    # x
                pl.BlockSpec((9 * M, N), lambda b: (0, 0)),      # gather matrix
                pl.BlockSpec((C, 9 * C), lambda b: (0, 0)),      # conv weights
                pl.BlockSpec((C, 1), lambda b: (0, 0)),          # bias
            ],
            out_specs=pl.BlockSpec((1, C, M), lambda b: (b, 0, 0)),
        ),
        compiler_params=pltpu.CompilerParams(dimension_semantics=("parallel",)),
    )(x_flat, dstk, wcat_t, bias_col)

    return out.reshape(B, C, 2 * H, 2 * W)                       # free reshape


# ---------------------------------------------------------------------------
# pure-JAX reference (for a sanity check)
# ---------------------------------------------------------------------------
def _reference(x, w, b):
    up = jnp.repeat(jnp.repeat(x, 2, axis=2), 2, axis=3)
    out = lax.conv_general_dilated(
        up, w, window_strides=(1, 1), padding=((1, 1), (1, 1)),
        dimension_numbers=("NCHW", "OIHW", "NCHW"),
        precision=lax.Precision.HIGHEST)
    return out + b.reshape(1, -1, 1, 1)


if __name__ == "__main__":
    B, C, H, W = 2, 64, 8, 8                     # small shapes consistent with the module

    key = jax.random.PRNGKey(0)
    k_x, k_w, k_b = jax.random.split(key, 3)
    x = jax.random.normal(k_x, (B, C, H, W), dtype=jnp.float32)
    bound = 1.0 / math.sqrt(C * 9)               # PyTorch Conv2d default init scale
    w = jax.random.uniform(k_w, (C, C, 3, 3), jnp.float32, -bound, bound)
    b = jax.random.uniform(k_b, (C,), jnp.float32, -bound, bound)

    out = up_sample(x, w, b)
    out = jax.block_until_ready(out)
    assert out.shape == (B, C, 2 * H, 2 * W)
    assert bool(jnp.all(jnp.isfinite(out)))

    # Compare against a reference evaluated on the same bf16-rounded operands
    # the kernel feeds the MXU (accumulation is f32 in both).
    x_r = x.astype(jnp.bfloat16).astype(jnp.float32)
    w_r = w.astype(jnp.bfloat16).astype(jnp.float32)
    ref = _reference(x_r, w_r, b)
    err = float(jnp.max(jnp.abs(out - ref)))
    assert err < 1e-2, f"max abs error too large: {err}"

    print("KERNEL_OK")
</pallas_src>

<mosaic_0001>
module attributes {stable_mosaic.version = 11 : i64} {
  func.func @kernel(%arg0: i32, %arg1: memref<1x64x64xf32, #tpu.memory_space<vmem>>, %arg2: memref<2304x64xbf16, #tpu.memory_space<vmem>>, %arg3: memref<64x576xbf16, #tpu.memory_space<vmem>>, %arg4: memref<64x1xf32, #tpu.memory_space<vmem>>, %arg5: memref<1x64x256xf32, #tpu.memory_space<vmem>>) attributes {dimension_semantics = [#tpu.dimension_semantics<parallel>], iteration_bounds = array<i64: 2>, scalar_prefetch = 0 : i64, scratch_operands = 0 : i64, tpu.core_type = #tpu.core_type<tc>, window_params = [{transform_indices = @transform_0, window_bounds = array<i64: 1, 64, 64>}, {pipeline_mode = #tpu.pipeline_mode<synchronous>, transform_indices = @transform_1, window_bounds = array<i64: 2304, 64>}, {pipeline_mode = #tpu.pipeline_mode<synchronous>, transform_indices = @transform_2, window_bounds = array<i64: 64, 576>}, {pipeline_mode = #tpu.pipeline_mode<synchronous>, transform_indices = @transform_3, window_bounds = array<i64: 64, 1>}, {transform_indices = @transform_4, window_bounds = array<i64: 1, 64, 256>}]} {
    %c0 = arith.constant 0 : index
    %c0_0 = arith.constant 0 : index
    %c0_1 = arith.constant 0 : index
    %0 = vector.load %arg1[%c0, %c0_0, %c0_1] : memref<1x64x64xf32, #tpu.memory_space<vmem>>, vector<1x64x64xf32>
    %1 = vector.shape_cast %0 : vector<1x64x64xf32> to vector<64x64xf32>
    %2 = arith.truncf %1 : vector<64x64xf32> to vector<64x64xbf16>
    %c0_2 = arith.constant 0 : index
    %c0_3 = arith.constant 0 : index
    %3 = vector.load %arg2[%c0_2, %c0_3] : memref<2304x64xbf16, #tpu.memory_space<vmem>>, vector<2304x64xbf16>
    %cst = arith.constant dense<0.000000e+00> : vector<64x2304xf32>
    %4 = tpu.matmul %2, %3, %cst {dimension_numbers = #tpu.dot_dimension_numbers<[1], [1], [0], [0], [0, 0, 1, 0], [], []>} : vector<64x64xbf16>, vector<2304x64xbf16>, vector<64x2304xf32> -> vector<64x2304xf32>
    %5 = arith.truncf %4 : vector<64x2304xf32> to vector<64x2304xbf16>
    %6 = vector.extract_strided_slice %5 {offsets = [0, 0], sizes = [64, 256], strides = [1, 1]} : vector<64x2304xbf16> to vector<64x256xbf16>
    %7 = vector.extract_strided_slice %5 {offsets = [0, 256], sizes = [64, 256], strides = [1, 1]} : vector<64x2304xbf16> to vector<64x256xbf16>
    %8 = vector.extract_strided_slice %5 {offsets = [0, 512], sizes = [64, 256], strides = [1, 1]} : vector<64x2304xbf16> to vector<64x256xbf16>
    %9 = vector.extract_strided_slice %5 {offsets = [0, 768], sizes = [64, 256], strides = [1, 1]} : vector<64x2304xbf16> to vector<64x256xbf16>
    %10 = vector.extract_strided_slice %5 {offsets = [0, 1024], sizes = [64, 256], strides = [1, 1]} : vector<64x2304xbf16> to vector<64x256xbf16>
    %11 = vector.extract_strided_slice %5 {offsets = [0, 1280], sizes = [64, 256], strides = [1, 1]} : vector<64x2304xbf16> to vector<64x256xbf16>
    %12 = vector.extract_strided_slice %5 {offsets = [0, 1536], sizes = [64, 256], strides = [1, 1]} : vector<64x2304xbf16> to vector<64x256xbf16>
    %13 = vector.extract_strided_slice %5 {offsets = [0, 1792], sizes = [64, 256], strides = [1, 1]} : vector<64x2304xbf16> to vector<64x256xbf16>
    %14 = vector.extract_strided_slice %5 {offsets = [0, 2048], sizes = [64, 256], strides = [1, 1]} : vector<64x2304xbf16> to vector<64x256xbf16>
    %15 = tpu.concatenate %6, %7, %8, %9, %10, %11, %12, %13, %14 in 0 : vector<64x256xbf16>, vector<64x256xbf16>, vector<64x256xbf16>, vector<64x256xbf16>, vector<64x256xbf16>, vector<64x256xbf16>, vector<64x256xbf16>, vector<64x256xbf16>, vector<64x256xbf16> -> vector<576x256xbf16>
    %c0_4 = arith.constant 0 : index
    %c0_5 = arith.constant 0 : index
    %16 = vector.load %arg3[%c0_4, %c0_5] : memref<64x576xbf16, #tpu.memory_space<vmem>>, vector<64x576xbf16>
    %cst_6 = arith.constant dense<0.000000e+00> : vector<64x256xf32>
    %17 = tpu.matmul %16, %15, %cst_6 {dimension_numbers = #tpu.dot_dimension_numbers<[1], [0], [0], [1], [0, 0, 1, 1], [], []>} : vector<64x576xbf16>, vector<576x256xbf16>, vector<64x256xf32> -> vector<64x256xf32>
    %c0_7 = arith.constant 0 : index
    %c0_8 = arith.constant 0 : index
    %18 = vector.load %arg4[%c0_7, %c0_8] : memref<64x1xf32, #tpu.memory_space<vmem>>, vector<64x1xf32>
    %19 = vector.broadcast %18 : vector<64x1xf32> to vector<64x256xf32>
    %20 = arith.addf %17, %19 : vector<64x256xf32>
    %c0_9 = arith.constant 0 : index
    %c0_10 = arith.constant 0 : index
    %c0_11 = arith.constant 0 : index
    %21 = vector.load %arg5[%c0_9, %c0_10, %c0_11] : memref<1x64x256xf32, #tpu.memory_space<vmem>>, vector<1x64x256xf32>
    %22 = vector.shape_cast %21 : vector<1x64x256xf32> to vector<64x256xf32>
    %23 = vector.shape_cast %20 : vector<64x256xf32> to vector<1x64x256xf32>
    tpu.vector_store %arg5[%c0_9, %c0_10, %c0_11], %23 {strides = array<i32>} : memref<1x64x256xf32, #tpu.memory_space<vmem>>, vector<1x64x256xf32>,
    return
  }
  func.func @transform_0(%arg0: i32) -> (i32, i32, i32) {
    %c0_i32 = arith.constant 0 : i32
    %c0_i32_0 = arith.constant 0 : i32
    %c0_i32_1 = arith.constant 0 : i32
    return %arg0, %c0_i32, %c0_i32_0 : i32, i32, i32
  }
  func.func @transform_1(%arg0: i32) -> (i32, i32) {
    %c0_i32 = arith.constant 0 : i32
    %c0_i32_0 = arith.constant 0 : i32
    %c0_i32_1 = arith.constant 0 : i32
    return %c0_i32, %c0_i32_0 : i32, i32
  }
  func.func @transform_2(%arg0: i32) -> (i32, i32) {
    %c0_i32 = arith.constant 0 : i32
    %c0_i32_0 = arith.constant 0 : i32
    %c0_i32_1 = arith.constant 0 : i32
    return %c0_i32, %c0_i32_0 : i32, i32
  }
  func.func @transform_3(%arg0: i32) -> (i32, i32) {
    %c0_i32 = arith.constant 0 : i32
    %c0_i32_0 = arith.constant 0 : i32
    %c0_i32_1 = arith.constant 0 : i32
    return %c0_i32, %c0_i32_0 : i32, i32
  }
  func.func @transform_4(%arg0: i32) -> (i32, i32, i32) {
    %c0_i32 = arith.constant 0 : i32
    %c0_i32_0 = arith.constant 0 : i32
    %c0_i32_1 = arith.constant 0 : i32
    return %arg0, %c0_i32, %c0_i32_0 : i32, i32, i32
  }
}

</mosaic_0001>

<llo_original>
// kernel: tpu_custom_call.1
$region0: #{tpu_custom_call.1}
  #allocation0 [shape = 'u32[]', space=smem, size = 0x4, offset = 0x4, fixed_abs, tag = 'smem constant byte address 0x4 - core index']
  #allocation1 [shape = 'u32[144,128]{1,0:T(1,128)}', space=vmem, size = 0x12000, scoped, tag = 'internal scratch']
  %s0 = inlined_call_operand.vmem [shape: f32[2,64,64], index: 0, kind: input, shape index: {}]
  %s1 = inlined_call_operand.vmem [shape: bf16[2304,64], index: 1, kind: input, shape index: {}]
  %s2 = inlined_call_operand.vmem [shape: bf16[64,576], index: 2, kind: input, shape index: {}]
  %s3 = inlined_call_operand.vmem [shape: f32[64,1], index: 3, kind: input, shape index: {}]
  %s4 = inlined_call_operand.hbm [shape: f32[2,64,256], index: 4, kind: output, shape index: {}]
  %s5 = sld [smem:[#allocation0]]
  $region49: #{tpu_custom_call.1} parent=0
    _
  %s7 = ssub.s32 1, %s5
  %s8 = scalar_select 0, %s7, %s5
  $region1: #{tpu_custom_call.1} parent=0
    #allocation2 [shape = 'u8[131072]{0}', space=vmem, size = 0x20000, scoped, tag = 'output window, operand 0']
    #allocation3 [shape = 's32[2]{0}', space=sflag, size = 0x8, scoped, tag = 'scoped memory for tpu_custom_call.1']
    %9 = vsyncpa [#allocation3], 0
    %s10 = scalar_lea.sflag [#allocation3], 1
    %11 = vsyncpa %s10, 0
    loop: start=0, step=1, limit=4
    $region2: #{tpu_custom_call.1} parent=1 // loop_pre_header
      _
    $region3: #{tpu_custom_call.1} parent=1 // loop_header
      %s13 = sphi 0, %s17
      %p14 = scmp.ge.s32.totalorder %s13, 4
      %s23 = sphi 0, %s25
      %s26 = sphi 0, %s23
      %s27 = sphi 0, %s26
      %s43 = sphi 0, %s27
      %s47 = sphi 0, %s47
      %s49 = sphi 0, %s47
      %s50 = sphi 0, %s49
      %s64 = sphi 0, %s50
      %s68 = sphi 0, %s68
      %s70 = sphi 0, %s68
      %s71 = sphi 0, %s70
      %s85 = sphi 0, %s71
      %s89 = sphi 0, %s89
      %s91 = sphi 0, %s89
      %s92 = sphi 0, %s91
      %s106 = sphi 0, %s92
      %s112 = sphi 0, %s114
      %s115 = sphi 0, %s112
      %s116 = sphi 0, %s115
      %s132 = sphi 0, %s116
    $region4: #{tpu_custom_call.1} parent=1 // loop_header_branch
      %16 = sbr.rel (%p14) target = $region8
    $region5: #{tpu_custom_call.1} parent=1 // loop_body
      %s18 = ssub.s32 %s13, 1
      %s19 = ssub.s32 %s13, 2
      %s20 = sadd.s32 %s13, 1
      %s21 = ssub.s32 %s13, %s20
      %p22 = scmp.eq.s32.totalorder %s21, 0
      %s24 = sadd.s32 %s23, 1
      %s25 = scalar_select %p22, %s23, %s24
      %p28 = pneg %p22
      %p29 = scmp.eq.s32.totalorder %s13, 1
      %p30 = por %p28, %p29
      %p31 = scmp.ne.s32.totalorder %s23, %s26
      %p32 = scmp.eq.s32.totalorder %s13, 0
      %p33 = por %p31, %p32
      %p34 = scmp.ne.s32.totalorder %s23, %s26
      %p35 = scmp.eq.s32.totalorder %s18, 1
      %p36 = por %p34, %p35
      %p37 = scmp.ne.s32.totalorder %s26, %s27
      %p38 = scmp.eq.s32.totalorder %s18, 0
      %p39 = por %p37, %p38
      %p40 = scmp.ne.s32.totalorder %s26, %s27
      %p41 = scmp.eq.s32.totalorder %s19, 1
      %p42 = por %p40, %p41
      %p44 = scmp.ne.s32.totalorder %s27, %s43
      %p45 = scmp.eq.s32.totalorder %s19, 0
      %p46 = por %p44, %p45
      %s48 = sadd.s32 %s47, 1
      %p51 = scmp.eq.s32.totalorder %s13, 1
      %p52 = scmp.ne.s32.totalorder %s47, %s49
      %p53 = scmp.eq.s32.totalorder %s13, 0
      %p54 = por %p52, %p53
      %p55 = scmp.ne.s32.totalorder %s47, %s49
      %p56 = scmp.eq.s32.totalorder %s18, 1
      %p57 = por %p55, %p56
      %p58 = scmp.ne.s32.totalorder %s49, %s50
      %p59 = scmp.eq.s32.totalorder %s18, 0
      %p60 = por %p58, %p59
      %p61 = scmp.ne.s32.totalorder %s49, %s50
      %p62 = scmp.eq.s32.totalorder %s19, 1
      %p63 = por %p61, %p62
      %p65 = scmp.ne.s32.totalorder %s50, %s64
      %p66 = scmp.eq.s32.totalorder %s19, 0
      %p67 = por %p65, %p66
      %s69 = sadd.s32 %s68, 1
      %p72 = scmp.eq.s32.totalorder %s13, 1
      %p73 = scmp.ne.s32.totalorder %s68, %s70
      %p74 = scmp.eq.s32.totalorder %s13, 0
      %p75 = por %p73, %p74
      %p76 = scmp.ne.s32.totalorder %s68, %s70
      %p77 = scmp.eq.s32.totalorder %s18, 1
      %p78 = por %p76, %p77
      %p79 = scmp.ne.s32.totalorder %s70, %s71
      %p80 = scmp.eq.s32.totalorder %s18, 0
      %p81 = por %p79, %p80
      %p82 = scmp.ne.s32.totalorder %s70, %s71
      %p83 = scmp.eq.s32.totalorder %s19, 1
      %p84 = por %p82, %p83
      %p86 = scmp.ne.s32.totalorder %s71, %s85
      %p87 = scmp.eq.s32.totalorder %s19, 0
      %p88 = por %p86, %p87
      %s90 = sadd.s32 %s89, 1
      %p93 = scmp.eq.s32.totalorder %s13, 1
      %p94 = scmp.ne.s32.totalorder %s89, %s91
      %p95 = scmp.eq.s32.totalorder %s13, 0
      %p96 = por %p94, %p95
      %p97 = scmp.ne.s32.totalorder %s89, %s91
      %p98 = scmp.eq.s32.totalorder %s18, 1
      %p99 = por %p97, %p98
      %p100 = scmp.ne.s32.totalorder %s91, %s92
      %p101 = scmp.eq.s32.totalorder %s18, 0
      %p102 = por %p100, %p101
      %p103 = scmp.ne.s32.totalorder %s91, %s92
      %p104 = scmp.eq.s32.totalorder %s19, 1
      %p105 = por %p103, %p104
      %p107 = scmp.ne.s32.totalorder %s92, %s106
      %p108 = scmp.eq.s32.totalorder %s19, 0
      %p109 = por %p107, %p108
      %s110 = ssub.s32 %s13, %s20
      %p111 = scmp.eq.s32.totalorder %s110, 0
      %s113 = sadd.s32 %s112, 1
      %s114 = scalar_select %p111, %s112, %s113
      %p117 = pneg %p111
      %p118 = scmp.eq.s32.totalorder %s13, 1
      %p119 = por %p117, %p118
      %p120 = scmp.ne.s32.totalorder %s112, %s115
      %p121 = scmp.eq.s32.totalorder %s13, 0
      %p122 = por %p120, %p121
      %p123 = scmp.ne.s32.totalorder %s112, %s115
      %p124 = scmp.eq.s32.totalorder %s18, 1
      %p125 = por %p123, %p124
      %p126 = scmp.ne.s32.totalorder %s115, %s116
      %p127 = scmp.eq.s32.totalorder %s18, 0
      %p128 = por %p126, %p127
      %p129 = scmp.ne.s32.totalorder %s115, %s116
      %p130 = scmp.eq.s32.totalorder %s19, 1
      %p131 = por %p129, %p130
      %p133 = scmp.ne.s32.totalorder %s116, %s132
      %p134 = scmp.eq.s32.totalorder %s19, 0
      %p135 = por %p133, %p134
      %p136 = scmp.le.s32.totalorder 1, %s13
      %p137 = scmp.lt.s32.totalorder %s13, 3
      %p138 = pnand %p136, %p137
      %p139 = pneg %p138
      // Predicated region
      $region9: #{tpu_custom_call.1} parent=5 // pred_check
        _
      $region10: #{tpu_custom_call.1} parent=5 // pred_check_branch
        %141 = sbr.rel (%p138) target = $region12
      $region11: #{tpu_custom_call.1} parent=5 // pred_region
        %s142 = ssub.s32 %s13, 1
        // Predicated region
        $region13: #{tpu_custom_call.1} parent=11 // pred_check
          %p143 = pneg %p60
        $region14: #{tpu_custom_call.1} parent=11 // pred_check_branch
          %145 = sbr.rel (%p143) target = $region16
        $region15: #{tpu_custom_call.1} parent=11 // pred_region
          _
        $region16: #{tpu_custom_call.1} parent=11 // pred_fallthru
          _
        // Predicated region
        $region17: #{tpu_custom_call.1} parent=11 // pred_check
          %p146 = pneg %p81
        $region18: #{tpu_custom_call.1} parent=11 // pred_check_branch
          %148 = sbr.rel (%p146) target = $region20
        $region19: #{tpu_custom_call.1} parent=11 // pred_region
          _
        $region20: #{tpu_custom_call.1} parent=11 // pred_fallthru
          _
        // Predicated region
        $region21: #{tpu_custom_call.1} parent=11 // pred_check
          %p149 = pneg %p102
        $region22: #{tpu_custom_call.1} parent=11 // pred_check_branch
          %151 = sbr.rel (%p149) target = $region24
        $region23: #{tpu_custom_call.1} parent=11 // pred_region
          _
        $region24: #{tpu_custom_call.1} parent=11 // pred_fallthru
          _
      $region12: #{tpu_custom_call.1} parent=5 // pred_fallthru
        _
      %p152 = scmp.lt.s32.totalorder %s13, 2
      // Predicated region
      $region25: #{tpu_custom_call.1} parent=5 // pred_check
        %p153 = pneg %p152
      $region26: #{tpu_custom_call.1} parent=5 // pred_check_branch
        %155 = sbr.rel (%p153) target = $region28
      $region27: #{tpu_custom_call.1} parent=5 // pred_region
        // Predicated region
        $region29: #{tpu_custom_call.1} parent=27 // pred_check
          %p156 = pneg %p33
        $region30: #{tpu_custom_call.1} parent=27 // pred_check_branch
          %158 = sbr.rel (%p156) target = $region32
        $region31: #{tpu_custom_call.1} parent=27 // pred_region
          %p159 = scmp.lt.s32.totalorder %s13, 1
          %s160 = scalar_select %p159, %s13, 1
          %s161 = smul.addr %s160, 8
          %s162 = smul.addr %s161, 8
          %s163 = scalar_lea.vmem %s0, %s162
        $region32: #{tpu_custom_call.1} parent=27 // pred_fallthru
          _
      $region28: #{tpu_custom_call.1} parent=5 // pred_fallthru
        _
      %p164 = scmp.le.s32.totalorder 1, %s13
      %p165 = scmp.lt.s32.totalorder %s13, 3
      %p166 = pnand %p164, %p165
      %p167 = pneg %p166
      // Predicated region
      $region33: #{tpu_custom_call.1} parent=5 // pred_check
        _
      $region34: #{tpu_custom_call.1} parent=5 // pred_check_branch
        %169 = sbr.rel (%p166) target = $region36
      $region35: #{tpu_custom_call.1} parent=5 // pred_region
        %s170 = ssub.s32 %s13, 1
        %p171 = scmp.lt.s32.totalorder %s18, 1
        %s172 = scalar_select %p171, %s18, 1
        %s173 = smul.addr %s172, 8
        %s174 = smul.addr %s173, 8
        %s175 = scalar_lea.vmem %s0, %s174
        %p176 = pneg %p39
        %p177 = pneg %p36
        %p178 = pneg %p60
        %p179 = pneg %p57
        %p180 = pneg %p81
        %p181 = pneg %p78
        %p182 = pneg %p102
        %p183 = pneg %p99
        %p184 = pneg %p128
        %p185 = pneg %p125
        %s186 = sand.u32 %s115, 1
        %s187 = scalar_lea.sflag [#allocation3], %s186
        %s188 = sand.u32 %s115, 1
        %s189 = smul.addr %s188, 128
        %s190 = scalar_lea.vmem [#allocation2], %s189
        %p191 = scmp.lt.s32.totalorder %s18, 1
        %s192 = scalar_select %p191, %s18, 1
        %s193 = smul.addr %s192, 8
        %s194 = smul.addr %s193, 8
        %s195 = scalar_lea.vmem %s0, %s194
        %v197 = vld [vmem:[%s195] sm:$0xff]
        %v198 = vld [vmem:[%s195 + $0x8] sm:$0xff]
        %v199 = vld [vmem:[%s195 + $0x10] sm:$0xff]
        %v200 = vld [vmem:[%s195 + $0x18] sm:$0xff]
        %v201 = vld [vmem:[%s195 + $0x20] sm:$0xff]
        %v202 = vld [vmem:[%s195 + $0x28] sm:$0xff]
        %v203 = vld [vmem:[%s195 + $0x30] sm:$0xff]
        %v204 = vld [vmem:[%s195 + $0x38] sm:$0xff]
        %v205 = vpack.c.bf16 %v198, %v197
        %v206 = vpack.c.bf16 %v200, %v199
        %v207 = vpack.c.bf16 %v202, %v201
        %v208 = vpack.c.bf16 %v204, %v203
        %v209 = vld [vmem:[%s1] sm:$0xf]
        %v210 = vld [vmem:[%s1 + $0x4] sm:$0xf]
        %v211 = vld [vmem:[%s1 + $0x8] sm:$0xf]
        %v212 = vld [vmem:[%s1 + $0xc] sm:$0xf]
        %v213 = vld [vmem:[%s1 + $0x10] sm:$0xf]
        %v214 = vld [vmem:[%s1 + $0x14] sm:$0xf]
        %v215 = vld [vmem:[%s1 + $0x18] sm:$0xf]
        %v216 = vld [vmem:[%s1 + $0x1c] sm:$0xf]
        %v217 = vld [vmem:[%s1 + $0x20] sm:$0xf]
        %v218 = vld [vmem:[%s1 + $0x24] sm:$0xf]
        %v219 = vld [vmem:[%s1 + $0x28] sm:$0xf]
        %v220 = vld [vmem:[%s1 + $0x2c] sm:$0xf]
        %v221 = vld [vmem:[%s1 + $0x30] sm:$0xf]
        %v222 = vld [vmem:[%s1 + $0x34] sm:$0xf]
        %v223 = vld [vmem:[%s1 + $0x38] sm:$0xf]
        %v224 = vld [vmem:[%s1 + $0x3c] sm:$0xf]
        %v225 = vld [vmem:[%s1 + $0x40] sm:$0xf]
        %v226 = vld [vmem:[%s1 + $0x44] sm:$0xf]
        %v227 = vld [vmem:[%s1 + $0x48] sm:$0xf]
        %v228 = vld [vmem:[%s1 + $0x4c] sm:$0xf]
        %v229 = vld [vmem:[%s1 + $0x50] sm:$0xf]
        %v230 = vld [vmem:[%s1 + $0x54] sm:$0xf]
        %v231 = vld [vmem:[%s1 + $0x58] sm:$0xf]
        %v232 = vld [vmem:[%s1 + $0x5c] sm:$0xf]
        %v233 = vld [vmem:[%s1 + $0x60] sm:$0xf]
        %v234 = vld [vmem:[%s1 + $0x64] sm:$0xf]
        %v235 = vld [vmem:[%s1 + $0x68] sm:$0xf]
        %v236 = vld [vmem:[%s1 + $0x6c] sm:$0xf]
        %v237 = vld [vmem:[%s1 + $0x70] sm:$0xf]
        %v238 = vld [vmem:[%s1 + $0x74] sm:$0xf]
        %v239 = vld [vmem:[%s1 + $0x78] sm:$0xf]
        %v240 = vld [vmem:[%s1 + $0x7c] sm:$0xf]
        %v241 = vld [vmem:[%s1 + $0x80] sm:$0xf]
        %v242 = vld [vmem:[%s1 + $0x84] sm:$0xf]
        %v243 = vld [vmem:[%s1 + $0x88] sm:$0xf]
        %v244 = vld [vmem:[%s1 + $0x8c] sm:$0xf]
        %v245 = vld [vmem:[%s1 + $0x90] sm:$0xf]
        %v246 = vld [vmem:[%s1 + $0x94] sm:$0xf]
        %v247 = vld [vmem:[%s1 + $0x98] sm:$0xf]
        %v248 = vld [vmem:[%s1 + $0x9c] sm:$0xf]
        %v249 = vld [vmem:[%s1 + $0xa0] sm:$0xf]
        %v250 = vld [vmem:[%s1 + $0xa4] sm:$0xf]
        %v251 = vld [vmem:[%s1 + $0xa8] sm:$0xf]
        %v252 = vld [vmem:[%s1 + $0xac] sm:$0xf]
        %v253 = vld [vmem:[%s1 + $0xb0] sm:$0xf]
        %v254 = vld [vmem:[%s1 + $0xb4] sm:$0xf]
        %v255 = vld [vmem:[%s1 + $0xb8] sm:$0xf]
        %v256 = vld [vmem:[%s1 + $0xbc] sm:$0xf]
        %v257 = vld [vmem:[%s1 + $0xc0] sm:$0xf]
        %v258 = vld [vmem:[%s1 + $0xc4] sm:$0xf]
        %v259 = vld [vmem:[%s1 + $0xc8] sm:$0xf]
        %v260 = vld [vmem:[%s1 + $0xcc] sm:$0xf]
        %v261 = vld [vmem:[%s1 + $0xd0] sm:$0xf]
        %v262 = vld [vmem:[%s1 + $0xd4] sm:$0xf]
        %v263 = vld [vmem:[%s1 + $0xd8] sm:$0xf]
        %v264 = vld [vmem:[%s1 + $0xdc] sm:$0xf]
        %v265 = vld [vmem:[%s1 + $0xe0] sm:$0xf]
        %v266 = vld [vmem:[%s1 + $0xe4] sm:$0xf]
        %v267 = vld [vmem:[%s1 + $0xe8] sm:$0xf]
        %v268 = vld [vmem:[%s1 + $0xec] sm:$0xf]
        %v269 = vld [vmem:[%s1 + $0xf0] sm:$0xf]
        %v270 = vld [vmem:[%s1 + $0xf4] sm:$0xf]
        %v271 = vld [vmem:[%s1 + $0xf8] sm:$0xf]
        %v272 = vld [vmem:[%s1 + $0xfc] sm:$0xf]
        %v273 = vld [vmem:[%s1 + $0x100] sm:$0xf]
        %v274 = vld [vmem:[%s1 + $0x104] sm:$0xf]
        %v275 = vld [vmem:[%s1 + $0x108] sm:$0xf]
        %v276 = vld [vmem:[%s1 + $0x10c] sm:$0xf]
        %v277 = vld [vmem:[%s1 + $0x110] sm:$0xf]
        %v278 = vld [vmem:[%s1 + $0x114] sm:$0xf]
        %v279 = vld [vmem:[%s1 + $0x118] sm:$0xf]
        %v280 = vld [vmem:[%s1 + $0x11c] sm:$0xf]
        %v281 = vld [vmem:[%s1 + $0x120] sm:$0xf]
        %v282 = vld [vmem:[%s1 + $0x124] sm:$0xf]
        %v283 = vld [vmem:[%s1 + $0x128] sm:$0xf]
        %v284 = vld [vmem:[%s1 + $0x12c] sm:$0xf]
        %v285 = vld [vmem:[%s1 + $0x130] sm:$0xf]
        %v286 = vld [vmem:[%s1 + $0x134] sm:$0xf]
        %v287 = vld [vmem:[%s1 + $0x138] sm:$0xf]
        %v288 = vld [vmem:[%s1 + $0x13c] sm:$0xf]
        %v289 = vld [vmem:[%s1 + $0x140] sm:$0xf]
        %v290 = vld [vmem:[%s1 + $0x144] sm:$0xf]
        %v291 = vld [vmem:[%s1 + $0x148] sm:$0xf]
        %v292 = vld [vmem:[%s1 + $0x14c] sm:$0xf]
        %v293 = vld [vmem:[%s1 + $0x150] sm:$0xf]
        %v294 = vld [vmem:[%s1 + $0x154] sm:$0xf]
        %v295 = vld [vmem:[%s1 + $0x158] sm:$0xf]
        %v296 = vld [vmem:[%s1 + $0x15c] sm:$0xf]
        %v297 = vld [vmem:[%s1 + $0x160] sm:$0xf]
        %v298 = vld [vmem:[%s1 + $0x164] sm:$0xf]
        %v299 = vld [vmem:[%s1 + $0x168] sm:$0xf]
        %v300 = vld [vmem:[%s1 + $0x16c] sm:$0xf]
        %v301 = vld [vmem:[%s1 + $0x170] sm:$0xf]
        %v302 = vld [vmem:[%s1 + $0x174] sm:$0xf]
        %v303 = vld [vmem:[%s1 + $0x178] sm:$0xf]
        %v304 = vld [vmem:[%s1 + $0x17c] sm:$0xf]
        %v305 = vld [vmem:[%s1 + $0x180] sm:$0xf]
        %v306 = vld [vmem:[%s1 + $0x184] sm:$0xf]
        %v307 = vld [vmem:[%s1 + $0x188] sm:$0xf]
        %v308 = vld [vmem:[%s1 + $0x18c] sm:$0xf]
        %v309 = vld [vmem:[%s1 + $0x190] sm:$0xf]
        %v310 = vld [vmem:[%s1 + $0x194] sm:$0xf]
        %v311 = vld [vmem:[%s1 + $0x198] sm:$0xf]
        %v312 = vld [vmem:[%s1 + $0x19c] sm:$0xf]
        %v313 = vld [vmem:[%s1 + $0x1a0] sm:$0xf]
        %v314 = vld [vmem:[%s1 + $0x1a4] sm:$0xf]
        %v315 = vld [vmem:[%s1 + $0x1a8] sm:$0xf]
        %v316 = vld [vmem:[%s1 + $0x1ac] sm:$0xf]
        %v317 = vld [vmem:[%s1 + $0x1b0] sm:$0xf]
        %v318 = vld [vmem:[%s1 + $0x1b4] sm:$0xf]
        %v319 = vld [vmem:[%s1 + $0x1b8] sm:$0xf]
        %v320 = vld [vmem:[%s1 + $0x1bc] sm:$0xf]
        %v321 = vld [vmem:[%s1 + $0x1c0] sm:$0xf]
        %v322 = vld [vmem:[%s1 + $0x1c4] sm:$0xf]
        %v323 = vld [vmem:[%s1 + $0x1c8] sm:$0xf]
        %v324 = vld [vmem:[%s1 + $0x1cc] sm:$0xf]
        %v325 = vld [vmem:[%s1 + $0x1d0] sm:$0xf]
        %v326 = vld [vmem:[%s1 + $0x1d4] sm:$0xf]
        %v327 = vld [vmem:[%s1 + $0x1d8] sm:$0xf]
        %v328 = vld [vmem:[%s1 + $0x1dc] sm:$0xf]
        %v329 = vld [vmem:[%s1 + $0x1e0] sm:$0xf]
        %v330 = vld [vmem:[%s1 + $0x1e4] sm:$0xf]
        %v331 = vld [vmem:[%s1 + $0x1e8] sm:$0xf]
        %v332 = vld [vmem:[%s1 + $0x1ec] sm:$0xf]
        %v333 = vld [vmem:[%s1 + $0x1f0] sm:$0xf]
        %v334 = vld [vmem:[%s1 + $0x1f4] sm:$0xf]
        %v335 = vld [vmem:[%s1 + $0x1f8] sm:$0xf]
        %v336 = vld [vmem:[%s1 + $0x1fc] sm:$0xf]
        %v337 = vld [vmem:[%s1 + $0x200] sm:$0xf]
        %v338 = vld [vmem:[%s1 + $0x204] sm:$0xf]
        %v339 = vld [vmem:[%s1 + $0x208] sm:$0xf]
        %v340 = vld [vmem:[%s1 + $0x20c] sm:$0xf]
        %v341 = vld [vmem:[%s1 + $0x210] sm:$0xf]
        %v342 = vld [vmem:[%s1 + $0x214] sm:$0xf]
        %v343 = vld [vmem:[%s1 + $0x218] sm:$0xf]
        %v344 = vld [vmem:[%s1 + $0x21c] sm:$0xf]
        %v345 = vld [vmem:[%s1 + $0x220] sm:$0xf]
        %v346 = vld [vmem:[%s1 + $0x224] sm:$0xf]
        %v347 = vld [vmem:[%s1 + $0x228] sm:$0xf]
        %v348 = vld [vmem:[%s1 + $0x22c] sm:$0xf]
        %v349 = vld [vmem:[%s1 + $0x230] sm:$0xf]
        %v350 = vld [vmem:[%s1 + $0x234] sm:$0xf]
        %v351 = vld [vmem:[%s1 + $0x238] sm:$0xf]
        %v352 = vld [vmem:[%s1 + $0x23c] sm:$0xf]
        %v353 = vld [vmem:[%s1 + $0x240] sm:$0xf]
        %v354 = vld [vmem:[%s1 + $0x244] sm:$0xf]
        %v355 = vld [vmem:[%s1 + $0x248] sm:$0xf]
        %v356 = vld [vmem:[%s1 + $0x24c] sm:$0xf]
        %v357 = vld [vmem:[%s1 + $0x250] sm:$0xf]
        %v358 = vld [vmem:[%s1 + $0x254] sm:$0xf]
        %v359 = vld [vmem:[%s1 + $0x258] sm:$0xf]
        %v360 = vld [vmem:[%s1 + $0x25c] sm:$0xf]
        %v361 = vld [vmem:[%s1 + $0x260] sm:$0xf]
        %v362 = vld [vmem:[%s1 + $0x264] sm:$0xf]
        %v363 = vld [vmem:[%s1 + $0x268] sm:$0xf]
        %v364 = vld [vmem:[%s1 + $0x26c] sm:$0xf]
        %v365 = vld [vmem:[%s1 + $0x270] sm:$0xf]
        %v366 = vld [vmem:[%s1 + $0x274] sm:$0xf]
        %v367 = vld [vmem:[%s1 + $0x278] sm:$0xf]
        %v368 = vld [vmem:[%s1 + $0x27c] sm:$0xf]
        %v369 = vld [vmem:[%s1 + $0x280] sm:$0xf]
        %v370 = vld [vmem:[%s1 + $0x284] sm:$0xf]
        %v371 = vld [vmem:[%s1 + $0x288] sm:$0xf]
        %v372 = vld [vmem:[%s1 + $0x28c] sm:$0xf]
        %v373 = vld [vmem:[%s1 + $0x290] sm:$0xf]
        %v374 = vld [vmem:[%s1 + $0x294] sm:$0xf]
        %v375 = vld [vmem:[%s1 + $0x298] sm:$0xf]
        %v376 = vld [vmem:[%s1 + $0x29c] sm:$0xf]
        %v377 = vld [vmem:[%s1 + $0x2a0] sm:$0xf]
        %v378 = vld [vmem:[%s1 + $0x2a4] sm:$0xf]
        %v379 = vld [vmem:[%s1 + $0x2a8] sm:$0xf]
        %v380 = vld [vmem:[%s1 + $0x2ac] sm:$0xf]
        %v381 = vld [vmem:[%s1 + $0x2b0] sm:$0xf]
        %v382 = vld [vmem:[%s1 + $0x2b4] sm:$0xf]
        %v383 = vld [vmem:[%s1 + $0x2b8] sm:$0xf]
        %v384 = vld [vmem:[%s1 + $0x2bc] sm:$0xf]
        %v385 = vld [vmem:[%s1 + $0x2c0] sm:$0xf]
        %v386 = vld [vmem:[%s1 + $0x2c4] sm:$0xf]
        %v387 = vld [vmem:[%s1 + $0x2c8] sm:$0xf]
        %v388 = vld [vmem:[%s1 + $0x2cc] sm:$0xf]
        %v389 = vld [vmem:[%s1 + $0x2d0] sm:$0xf]
        %v390 = vld [vmem:[%s1 + $0x2d4] sm:$0xf]
        %v391 = vld [vmem:[%s1 + $0x2d8] sm:$0xf]
        %v392 = vld [vmem:[%s1 + $0x2dc] sm:$0xf]
        %v393 = vld [vmem:[%s1 + $0x2e0] sm:$0xf]
        %v394 = vld [vmem:[%s1 + $0x2e4] sm:$0xf]
        %v395 = vld [vmem:[%s1 + $0x2e8] sm:$0xf]
        %v396 = vld [vmem:[%s1 + $0x2ec] sm:$0xf]
        %v397 = vld [vmem:[%s1 + $0x2f0] sm:$0xf]
        %v398 = vld [vmem:[%s1 + $0x2f4] sm:$0xf]
        %v399 = vld [vmem:[%s1 + $0x2f8] sm:$0xf]
        %v400 = vld [vmem:[%s1 + $0x2fc] sm:$0xf]
        %v401 = vld [vmem:[%s1 + $0x300] sm:$0xf]
        %v402 = vld [vmem:[%s1 + $0x304] sm:$0xf]
        %v403 = vld [vmem:[%s1 + $0x308] sm:$0xf]
        %v404 = vld [vmem:[%s1 + $0x30c] sm:$0xf]
        %v405 = vld [vmem:[%s1 + $0x310] sm:$0xf]
        %v406 = vld [vmem:[%s1 + $0x314] sm:$0xf]
        %v407 = vld [vmem:[%s1 + $0x318] sm:$0xf]
        %v408 = vld [vmem:[%s1 + $0x31c] sm:$0xf]
        %v409 = vld [vmem:[%s1 + $0x320] sm:$0xf]
        %v410 = vld [vmem:[%s1 + $0x324] sm:$0xf]
        %v411 = vld [vmem:[%s1 + $0x328] sm:$0xf]
        %v412 = vld [vmem:[%s1 + $0x32c] sm:$0xf]
        %v413 = vld [vmem:[%s1 + $0x330] sm:$0xf]
        %v414 = vld [vmem:[%s1 + $0x334] sm:$0xf]
        %v415 = vld [vmem:[%s1 + $0x338] sm:$0xf]
        %v416 = vld [vmem:[%s1 + $0x33c] sm:$0xf]
        %v417 = vld [vmem:[%s1 + $0x340] sm:$0xf]
        %v418 = vld [vmem:[%s1 + $0x344] sm:$0xf]
        %v419 = vld [vmem:[%s1 + $0x348] sm:$0xf]
        %v420 = vld [vmem:[%s1 + $0x34c] sm:$0xf]
        %v421 = vld [vmem:[%s1 + $0x350] sm:$0xf]
        %v422 = vld [vmem:[%s1 + $0x354] sm:$0xf]
        %v423 = vld [vmem:[%s1 + $0x358] sm:$0xf]
        %v424 = vld [vmem:[%s1 + $0x35c] sm:$0xf]
        %v425 = vld [vmem:[%s1 + $0x360] sm:$0xf]
        %v426 = vld [vmem:[%s1 + $0x364] sm:$0xf]
        %v427 = vld [vmem:[%s1 + $0x368] sm:$0xf]
        %v428 = vld [vmem:[%s1 + $0x36c] sm:$0xf]
        %v429 = vld [vmem:[%s1 + $0x370] sm:$0xf]
        %v430 = vld [vmem:[%s1 + $0x374] sm:$0xf]
        %v431 = vld [vmem:[%s1 + $0x378] sm:$0xf]
        %v432 = vld [vmem:[%s1 + $0x37c] sm:$0xf]
        %v433 = vld [vmem:[%s1 + $0x380] sm:$0xf]
        %v434 = vld [vmem:[%s1 + $0x384] sm:$0xf]
        %v435 = vld [vmem:[%s1 + $0x388] sm:$0xf]
        %v436 = vld [vmem:[%s1 + $0x38c] sm:$0xf]
        %v437 = vld [vmem:[%s1 + $0x390] sm:$0xf]
        %v438 = vld [vmem:[%s1 + $0x394] sm:$0xf]
        %v439 = vld [vmem:[%s1 + $0x398] sm:$0xf]
        %v440 = vld [vmem:[%s1 + $0x39c] sm:$0xf]
        %v441 = vld [vmem:[%s1 + $0x3a0] sm:$0xf]
        %v442 = vld [vmem:[%s1 + $0x3a4] sm:$0xf]
        %v443 = vld [vmem:[%s1 + $0x3a8] sm:$0xf]
        %v444 = vld [vmem:[%s1 + $0x3ac] sm:$0xf]
        %v445 = vld [vmem:[%s1 + $0x3b0] sm:$0xf]
        %v446 = vld [vmem:[%s1 + $0x3b4] sm:$0xf]
        %v447 = vld [vmem:[%s1 + $0x3b8] sm:$0xf]
        %v448 = vld [vmem:[%s1 + $0x3bc] sm:$0xf]
        %v449 = vld [vmem:[%s1 + $0x3c0] sm:$0xf]
        %v450 = vld [vmem:[%s1 + $0x3c4] sm:$0xf]
        %v451 = vld [vmem:[%s1 + $0x3c8] sm:$0xf]
        %v452 = vld [vmem:[%s1 + $0x3cc] sm:$0xf]
        %v453 = vld [vmem:[%s1 + $0x3d0] sm:$0xf]
        %v454 = vld [vmem:[%s1 + $0x3d4] sm:$0xf]
        %v455 = vld [vmem:[%s1 + $0x3d8] sm:$0xf]
        %v456 = vld [vmem:[%s1 + $0x3dc] sm:$0xf]
        %v457 = vld [vmem:[%s1 + $0x3e0] sm:$0xf]
        %v458 = vld [vmem:[%s1 + $0x3e4] sm:$0xf]
        %v459 = vld [vmem:[%s1 + $0x3e8] sm:$0xf]
        %v460 = vld [vmem:[%s1 + $0x3ec] sm:$0xf]
        %v461 = vld [vmem:[%s1 + $0x3f0] sm:$0xf]
        %v462 = vld [vmem:[%s1 + $0x3f4] sm:$0xf]
        %v463 = vld [vmem:[%s1 + $0x3f8] sm:$0xf]
        %v464 = vld [vmem:[%s1 + $0x3fc] sm:$0xf]
        %v465 = vld [vmem:[%s1 + $0x400] sm:$0xf]
        %v466 = vld [vmem:[%s1 + $0x404] sm:$0xf]
        %v467 = vld [vmem:[%s1 + $0x408] sm:$0xf]
        %v468 = vld [vmem:[%s1 + $0x40c] sm:$0xf]
        %v469 = vld [vmem:[%s1 + $0x410] sm:$0xf]
        %v470 = vld [vmem:[%s1 + $0x414] sm:$0xf]
        %v471 = vld [vmem:[%s1 + $0x418] sm:$0xf]
        %v472 = vld [vmem:[%s1 + $0x41c] sm:$0xf]
        %v473 = vld [vmem:[%s1 + $0x420] sm:$0xf]
        %v474 = vld [vmem:[%s1 + $0x424] sm:$0xf]
        %v475 = vld [vmem:[%s1 + $0x428] sm:$0xf]
        %v476 = vld [vmem:[%s1 + $0x42c] sm:$0xf]
        %v477 = vld [vmem:[%s1 + $0x430] sm:$0xf]
        %v478 = vld [vmem:[%s1 + $0x434] sm:$0xf]
        %v479 = vld [vmem:[%s1 + $0x438] sm:$0xf]
        %v480 = vld [vmem:[%s1 + $0x43c] sm:$0xf]
        %v481 = vld [vmem:[%s1 + $0x440] sm:$0xf]
        %v482 = vld [vmem:[%s1 + $0x444] sm:$0xf]
        %v483 = vld [vmem:[%s1 + $0x448] sm:$0xf]
        %v484 = vld [vmem:[%s1 + $0x44c] sm:$0xf]
        %v485 = vld [vmem:[%s1 + $0x450] sm:$0xf]
        %v486 = vld [vmem:[%s1 + $0x454] sm:$0xf]
        %v487 = vld [vmem:[%s1 + $0x458] sm:$0xf]
        %v488 = vld [vmem:[%s1 + $0x45c] sm:$0xf]
        %v489 = vld [vmem:[%s1 + $0x460] sm:$0xf]
        %v490 = vld [vmem:[%s1 + $0x464] sm:$0xf]
        %v491 = vld [vmem:[%s1 + $0x468] sm:$0xf]
        %v492 = vld [vmem:[%s1 + $0x46c] sm:$0xf]
        %v493 = vld [vmem:[%s1 + $0x470] sm:$0xf]
        %v494 = vld [vmem:[%s1 + $0x474] sm:$0xf]
        %v495 = vld [vmem:[%s1 + $0x478] sm:$0xf]
        %v496 = vld [vmem:[%s1 + $0x47c] sm:$0xf]
        %v785 = vunpack.c.l.b16 %v209
        %v786 = vunpack.c.l.b16 %v210
        %v787 = vunpack.c.l.b16 %v211
        %v788 = vunpack.c.l.b16 %v212
        %v789 = vunpack.c.l.b16 %v213
        %v790 = vunpack.c.l.b16 %v214
        %v791 = vunpack.c.l.b16 %v215
        %v792 = vunpack.c.l.b16 %v216
        %v793 = vunpack.c.l.b16 %v217
        %v794 = vunpack.c.l.b16 %v218
        %v795 = vunpack.c.l.b16 %v219
        %v796 = vunpack.c.l.b16 %v220
        %v797 = vunpack.c.l.b16 %v221
        %v798 = vunpack.c.l.b16 %v222
        %v799 = vunpack.c.l.b16 %v223
        %v800 = vunpack.c.l.b16 %v224
        %v801 = vunpack.c.l.b16 %v225
        %v802 = vunpack.c.l.b16 %v226
        %v803 = vunpack.c.l.b16 %v227
        %v804 = vunpack.c.l.b16 %v228
        %v805 = vunpack.c.l.b16 %v229
        %v806 = vunpack.c.l.b16 %v230
        %v807 = vunpack.c.l.b16 %v231
        %v808 = vunpack.c.l.b16 %v232
        %v809 = vunpack.c.l.b16 %v233
        %v810 = vunpack.c.l.b16 %v234
        %v811 = vunpack.c.l.b16 %v235
        %v812 = vunpack.c.l.b16 %v236
        %v813 = vunpack.c.l.b16 %v237
        %v814 = vunpack.c.l.b16 %v238
        %v815 = vunpack.c.l.b16 %v239
        %v816 = vunpack.c.l.b16 %v240
        %v817 = vunpack.c.l.b16 %v241
        %v818 = vunpack.c.l.b16 %v242
        %v819 = vunpack.c.l.b16 %v243
        %v820 = vunpack.c.l.b16 %v244
        %v821 = vunpack.c.l.b16 %v245
        %v822 = vunpack.c.l.b16 %v246
        %v823 = vunpack.c.l.b16 %v247
        %v824 = vunpack.c.l.b16 %v248
        %v825 = vunpack.c.l.b16 %v249
        %v826 = vunpack.c.l.b16 %v250
        %v827 = vunpack.c.l.b16 %v251
        %v828 = vunpack.c.l.b16 %v252
        %v829 = vunpack.c.l.b16 %v253
        %v830 = vunpack.c.l.b16 %v254
        %v831 = vunpack.c.l.b16 %v255
        %v832 = vunpack.c.l.b16 %v256
        %v833 = vunpack.c.l.b16 %v257
        %v834 = vunpack.c.l.b16 %v258
        %v835 = vunpack.c.l.b16 %v259
        %v836 = vunpack.c.l.b16 %v260
        %v837 = vunpack.c.l.b16 %v261
        %v838 = vunpack.c.l.b16 %v262
        %v839 = vunpack.c.l.b16 %v263
        %v840 = vunpack.c.l.b16 %v264
        %v841 = vunpack.c.l.b16 %v265
        %v842 = vunpack.c.l.b16 %v266
        %v843 = vunpack.c.l.b16 %v267
        %v844 = vunpack.c.l.b16 %v268
        %v845 = vunpack.c.l.b16 %v269
        %v846 = vunpack.c.l.b16 %v270
        %v847 = vunpack.c.l.b16 %v271
        %v848 = vunpack.c.l.b16 %v272
        %v849 = vunpack.c.l.b16 %v273
        %v850 = vunpack.c.l.b16 %v274
        %v851 = vunpack.c.l.b16 %v275
        %v852 = vunpack.c.l.b16 %v276
        %v853 = vunpack.c.l.b16 %v277
        %v854 = vunpack.c.l.b16 %v278
        %v855 = vunpack.c.l.b16 %v279
        %v856 = vunpack.c.l.b16 %v280
        %v857 = vunpack.c.l.b16 %v281
        %v858 = vunpack.c.l.b16 %v282
        %v859 = vunpack.c.l.b16 %v283
        %v860 = vunpack.c.l.b16 %v284
        %v861 = vunpack.c.l.b16 %v285
        %v862 = vunpack.c.l.b16 %v286
        %v863 = vunpack.c.l.b16 %v287
        %v864 = vunpack.c.l.b16 %v288
        %v865 = vunpack.c.l.b16 %v289
        %v866 = vunpack.c.l.b16 %v290
        %v867 = vunpack.c.l.b16 %v291
        %v868 = vunpack.c.l.b16 %v292
        %v869 = vunpack.c.l.b16 %v293
        %v870 = vunpack.c.l.b16 %v294
        %v871 = vunpack.c.l.b16 %v295
        %v872 = vunpack.c.l.b16 %v296
        %v873 = vunpack.c.l.b16 %v297
        %v874 = vunpack.c.l.b16 %v298
        %v875 = vunpack.c.l.b16 %v299
        %v876 = vunpack.c.l.b16 %v300
        %v877 = vunpack.c.l.b16 %v301
        %v878 = vunpack.c.l.b16 %v302
        %v879 = vunpack.c.l.b16 %v303
        %v880 = vunpack.c.l.b16 %v304
        %v881 = vunpack.c.l.b16 %v305
        %v882 = vunpack.c.l.b16 %v306
        %v883 = vunpack.c.l.b16 %v307
        %v884 = vunpack.c.l.b16 %v308
        %v885 = vunpack.c.l.b16 %v309
        %v886 = vunpack.c.l.b16 %v310
        %v887 = vunpack.c.l.b16 %v311
        %v888 = vunpack.c.l.b16 %v312
        %v889 = vunpack.c.l.b16 %v313
        %v890 = vunpack.c.l.b16 %v314
        %v891 = vunpack.c.l.b16 %v315
        %v892 = vunpack.c.l.b16 %v316
        %v893 = vunpack.c.l.b16 %v317
        %v894 = vunpack.c.l.b16 %v318
        %v895 = vunpack.c.l.b16 %v319
        %v896 = vunpack.c.l.b16 %v320
        %v897 = vunpack.c.l.b16 %v321
        %v898 = vunpack.c.l.b16 %v322
        %v899 = vunpack.c.l.b16 %v323
        %v900 = vunpack.c.l.b16 %v324
        %v901 = vunpack.c.l.b16 %v325
        %v902 = vunpack.c.l.b16 %v326
        %v903 = vunpack.c.l.b16 %v327
        %v904 = vunpack.c.l.b16 %v328
        %v905 = vunpack.c.l.b16 %v329
        %v906 = vunpack.c.l.b16 %v330
        %v907 = vunpack.c.l.b16 %v331
        %v908 = vunpack.c.l.b16 %v332
        %v909 = vunpack.c.l.b16 %v333
        %v910 = vunpack.c.l.b16 %v334
        %v911 = vunpack.c.l.b16 %v335
        %v912 = vunpack.c.l.b16 %v336
        %v913 = vunpack.c.l.b16 %v337
        %v914 = vunpack.c.l.b16 %v338
        %v915 = vunpack.c.l.b16 %v339
        %v916 = vunpack.c.l.b16 %v340
        %v917 = vunpack.c.l.b16 %v341
        %v918 = vunpack.c.l.b16 %v342
        %v919 = vunpack.c.l.b16 %v343
        %v920 = vunpack.c.l.b16 %v344
        %v921 = vunpack.c.l.b16 %v345
        %v922 = vunpack.c.l.b16 %v346
        %v923 = vunpack.c.l.b16 %v347
        %v924 = vunpack.c.l.b16 %v348
        %v925 = vunpack.c.l.b16 %v349
        %v926 = vunpack.c.l.b16 %v350
        %v927 = vunpack.c.l.b16 %v351
        %v928 = vunpack.c.l.b16 %v352
        %v929 = vunpack.c.l.b16 %v353
        %v930 = vunpack.c.l.b16 %v354
        %v931 = vunpack.c.l.b16 %v355
        %v932 = vunpack.c.l.b16 %v356
        %v933 = vunpack.c.l.b16 %v357
        %v934 = vunpack.c.l.b16 %v358
        %v935 = vunpack.c.l.b16 %v359
        %v936 = vunpack.c.l.b16 %v360
        %v937 = vunpack.c.l.b16 %v361
        %v938 = vunpack.c.l.b16 %v362
        %v939 = vunpack.c.l.b16 %v363
        %v940 = vunpack.c.l.b16 %v364
        %v941 = vunpack.c.l.b16 %v365
        %v942 = vunpack.c.l.b16 %v366
        %v943 = vunpack.c.l.b16 %v367
        %v944 = vunpack.c.l.b16 %v368
        %v945 = vunpack.c.l.b16 %v369
        %v946 = vunpack.c.l.b16 %v370
        %v947 = vunpack.c.l.b16 %v371
        %v948 = vunpack.c.l.b16 %v372
        %v949 = vunpack.c.l.b16 %v373
        %v950 = vunpack.c.l.b16 %v374
        %v951 = vunpack.c.l.b16 %v375
        %v952 = vunpack.c.l.b16 %v376
        %v953 = vunpack.c.l.b16 %v377
        %v954 = vunpack.c.l.b16 %v378
        %v955 = vunpack.c.l.b16 %v379
        %v956 = vunpack.c.l.b16 %v380
        %v957 = vunpack.c.l.b16 %v381
        %v958 = vunpack.c.l.b16 %v382
        %v959 = vunpack.c.l.b16 %v383
        %v960 = vunpack.c.l.b16 %v384
        %v961 = vunpack.c.l.b16 %v385
        %v962 = vunpack.c.l.b16 %v386
        %v963 = vunpack.c.l.b16 %v387
        %v964 = vunpack.c.l.b16 %v388
        %v965 = vunpack.c.l.b16 %v389
        %v966 = vunpack.c.l.b16 %v390
        %v967 = vunpack.c.l.b16 %v391
        %v968 = vunpack.c.l.b16 %v392
        %v969 = vunpack.c.l.b16 %v393
        %v970 = vunpack.c.l.b16 %v394
        %v971 = vunpack.c.l.b16 %v395
        %v972 = vunpack.c.l.b16 %v396
        %v973 = vunpack.c.l.b16 %v397
        %v974 = vunpack.c.l.b16 %v398
        %v975 = vunpack.c.l.b16 %v399
        %v976 = vunpack.c.l.b16 %v400
        %v977 = vunpack.c.l.b16 %v401
        %v978 = vunpack.c.l.b16 %v402
        %v979 = vunpack.c.l.b16 %v403
        %v980 = vunpack.c.l.b16 %v404
        %v981 = vunpack.c.l.b16 %v405
        %v982 = vunpack.c.l.b16 %v406
        %v983 = vunpack.c.l.b16 %v407
        %v984 = vunpack.c.l.b16 %v408
        %v985 = vunpack.c.l.b16 %v409
        %v986 = vunpack.c.l.b16 %v410
        %v987 = vunpack.c.l.b16 %v411
        %v988 = vunpack.c.l.b16 %v412
        %v989 = vunpack.c.l.b16 %v413
        %v990 = vunpack.c.l.b16 %v414
        %v991 = vunpack.c.l.b16 %v415
        %v992 = vunpack.c.l.b16 %v416
        %v993 = vunpack.c.l.b16 %v417
        %v994 = vunpack.c.l.b16 %v418
        %v995 = vunpack.c.l.b16 %v419
        %v996 = vunpack.c.l.b16 %v420
        %v997 = vunpack.c.l.b16 %v421
        %v998 = vunpack.c.l.b16 %v422
        %v999 = vunpack.c.l.b16 %v423
        %v1000 = vunpack.c.l.b16 %v424
        %v1001 = vunpack.c.l.b16 %v425
        %v1002 = vunpack.c.l.b16 %v426
        %v1003 = vunpack.c.l.b16 %v427
        %v1004 = vunpack.c.l.b16 %v428
        %v1005 = vunpack.c.l.b16 %v429
        %v1006 = vunpack.c.l.b16 %v430
        %v1007 = vunpack.c.l.b16 %v431
        %v1008 = vunpack.c.l.b16 %v432
        %v1009 = vunpack.c.l.b16 %v433
        %v1010 = vunpack.c.l.b16 %v434
        %v1011 = vunpack.c.l.b16 %v435
        %v1012 = vunpack.c.l.b16 %v436
        %v1013 = vunpack.c.l.b16 %v437
        %v1014 = vunpack.c.l.b16 %v438
        %v1015 = vunpack.c.l.b16 %v439
        %v1016 = vunpack.c.l.b16 %v440
        %v1017 = vunpack.c.l.b16 %v441
        %v1018 = vunpack.c.l.b16 %v442
        %v1019 = vunpack.c.l.b16 %v443
        %v1020 = vunpack.c.l.b16 %v444
        %v1021 = vunpack.c.l.b16 %v445
        %v1022 = vunpack.c.l.b16 %v446
        %v1023 = vunpack.c.l.b16 %v447
        %v1024 = vunpack.c.l.b16 %v448
        %v1025 = vunpack.c.l.b16 %v449
        %v1026 = vunpack.c.l.b16 %v450
        %v1027 = vunpack.c.l.b16 %v451
        %v1028 = vunpack.c.l.b16 %v452
        %v1029 = vunpack.c.l.b16 %v453
        %v1030 = vunpack.c.l.b16 %v454
        %v1031 = vunpack.c.l.b16 %v455
        %v1032 = vunpack.c.l.b16 %v456
        %v1033 = vunpack.c.l.b16 %v457
        %v1034 = vunpack.c.l.b16 %v458
        %v1035 = vunpack.c.l.b16 %v459
        %v1036 = vunpack.c.l.b16 %v460
        %v1037 = vunpack.c.l.b16 %v461
        %v1038 = vunpack.c.l.b16 %v462
        %v1039 = vunpack.c.l.b16 %v463
        %v1040 = vunpack.c.l.b16 %v464
        %v1041 = vunpack.c.l.b16 %v465
        %v1042 = vunpack.c.l.b16 %v466
        %v1043 = vunpack.c.l.b16 %v467
        %v1044 = vunpack.c.l.b16 %v468
        %v1045 = vunpack.c.l.b16 %v469
        %v1046 = vunpack.c.l.b16 %v470
        %v1047 = vunpack.c.l.b16 %v471
        %v1048 = vunpack.c.l.b16 %v472
        %v1049 = vunpack.c.l.b16 %v473
        %v1050 = vunpack.c.l.b16 %v474
        %v1051 = vunpack.c.l.b16 %v475
        %v1052 = vunpack.c.l.b16 %v476
        %v1053 = vunpack.c.l.b16 %v477
        %v1054 = vunpack.c.l.b16 %v478
        %v1055 = vunpack.c.l.b16 %v479
        %v1056 = vunpack.c.l.b16 %v480
        %v1057 = vunpack.c.l.b16 %v481
        %v1058 = vunpack.c.l.b16 %v482
        %v1059 = vunpack.c.l.b16 %v483
        %v1060 = vunpack.c.l.b16 %v484
        %v1061 = vunpack.c.l.b16 %v485
        %v1062 = vunpack.c.l.b16 %v486
        %v1063 = vunpack.c.l.b16 %v487
        %v1064 = vunpack.c.l.b16 %v488
        %v1065 = vunpack.c.l.b16 %v489
        %v1066 = vunpack.c.l.b16 %v490
        %v1067 = vunpack.c.l.b16 %v491
        %v1068 = vunpack.c.l.b16 %v492
        %v1069 = vunpack.c.l.b16 %v493
        %v1070 = vunpack.c.l.b16 %v494
        %v1071 = vunpack.c.l.b16 %v495
        %v1072 = vunpack.c.l.b16 %v496
        %v1073 = vpack.c.b16 %v786, %v785
        %v1074 = vpack.c.b16 %v788, %v787
        %v1075 = vpack.c.b16 %v790, %v789
        %v1076 = vpack.c.b16 %v792, %v791
        %v1077 = vpack.c.b16 %v794, %v793
        %v1078 = vpack.c.b16 %v796, %v795
        %v1079 = vpack.c.b16 %v798, %v797
        %v1080 = vpack.c.b16 %v800, %v799
        %v1081 = vpack.c.b16 %v802, %v801
        %v1082 = vpack.c.b16 %v804, %v803
        %v1083 = vpack.c.b16 %v806, %v805
        %v1084 = vpack.c.b16 %v808, %v807
        %v1085 = vpack.c.b16 %v810, %v809
        %v1086 = vpack.c.b16 %v812, %v811
        %v1087 = vpack.c.b16 %v814, %v813
        %v1088 = vpack.c.b16 %v816, %v815
        %v1089 = vpack.c.b16 %v818, %v817
        %v1090 = vpack.c.b16 %v820, %v819
        %v1091 = vpack.c.b16 %v822, %v821
        %v1092 = vpack.c.b16 %v824, %v823
        %v1093 = vpack.c.b16 %v826, %v825
        %v1094 = vpack.c.b16 %v828, %v827
        %v1095 = vpack.c.b16 %v830, %v829
        %v1096 = vpack.c.b16 %v832, %v831
        %v1097 = vpack.c.b16 %v834, %v833
        %v1098 = vpack.c.b16 %v836, %v835
        %v1099 = vpack.c.b16 %v838, %v837
        %v1100 = vpack.c.b16 %v840, %v839
        %v1101 = vpack.c.b16 %v842, %v841
        %v1102 = vpack.c.b16 %v844, %v843
        %v1103 = vpack.c.b16 %v846, %v845
        %v1104 = vpack.c.b16 %v848, %v847
        %v1105 = vpack.c.b16 %v850, %v849
        %v1106 = vpack.c.b16 %v852, %v851
        %v1107 = vpack.c.b16 %v854, %v853
        %v1108 = vpack.c.b16 %v856, %v855
        %v1109 = vpack.c.b16 %v858, %v857
        %v1110 = vpack.c.b16 %v860, %v859
        %v1111 = vpack.c.b16 %v862, %v861
        %v1112 = vpack.c.b16 %v864, %v863
        %v1113 = vpack.c.b16 %v866, %v865
        %v1114 = vpack.c.b16 %v868, %v867
        %v1115 = vpack.c.b16 %v870, %v869
        %v1116 = vpack.c.b16 %v872, %v871
        %v1117 = vpack.c.b16 %v874, %v873
        %v1118 = vpack.c.b16 %v876, %v875
        %v1119 = vpack.c.b16 %v878, %v877
        %v1120 = vpack.c.b16 %v880, %v879
        %v1121 = vpack.c.b16 %v882, %v881
        %v1122 = vpack.c.b16 %v884, %v883
        %v1123 = vpack.c.b16 %v886, %v885
        %v1124 = vpack.c.b16 %v888, %v887
        %v1125 = vpack.c.b16 %v890, %v889
        %v1126 = vpack.c.b16 %v892, %v891
        %v1127 = vpack.c.b16 %v894, %v893
        %v1128 = vpack.c.b16 %v896, %v895
        %v1129 = vpack.c.b16 %v898, %v897
        %v1130 = vpack.c.b16 %v900, %v899
        %v1131 = vpack.c.b16 %v902, %v901
        %v1132 = vpack.c.b16 %v904, %v903
        %v1133 = vpack.c.b16 %v906, %v905
        %v1134 = vpack.c.b16 %v908, %v907
        %v1135 = vpack.c.b16 %v910, %v909
        %v1136 = vpack.c.b16 %v912, %v911
        %v1137 = vpack.c.b16 %v914, %v913
        %v1138 = vpack.c.b16 %v916, %v915
        %v1139 = vpack.c.b16 %v918, %v917
        %v1140 = vpack.c.b16 %v920, %v919
        %v1141 = vpack.c.b16 %v922, %v921
        %v1142 = vpack.c.b16 %v924, %v923
        %v1143 = vpack.c.b16 %v926, %v925
        %v1144 = vpack.c.b16 %v928, %v927
        %v1145 = vpack.c.b16 %v930, %v929
        %v1146 = vpack.c.b16 %v932, %v931
        %v1147 = vpack.c.b16 %v934, %v933
        %v1148 = vpack.c.b16 %v936, %v935
        %v1149 = vpack.c.b16 %v938, %v937
        %v1150 = vpack.c.b16 %v940, %v939
        %v1151 = vpack.c.b16 %v942, %v941
        %v1152 = vpack.c.b16 %v944, %v943
        %v1153 = vpack.c.b16 %v946, %v945
        %v1154 = vpack.c.b16 %v948, %v947
        %v1155 = vpack.c.b16 %v950, %v949
        %v1156 = vpack.c.b16 %v952, %v951
        %v1157 = vpack.c.b16 %v954, %v953
        %v1158 = vpack.c.b16 %v956, %v955
        %v1159 = vpack.c.b16 %v958, %v957
        %v1160 = vpack.c.b16 %v960, %v959
        %v1161 = vpack.c.b16 %v962, %v961
        %v1162 = vpack.c.b16 %v964, %v963
        %v1163 = vpack.c.b16 %v966, %v965
        %v1164 = vpack.c.b16 %v968, %v967
        %v1165 = vpack.c.b16 %v970, %v969
        %v1166 = vpack.c.b16 %v972, %v971
        %v1167 = vpack.c.b16 %v974, %v973
        %v1168 = vpack.c.b16 %v976, %v975
        %v1169 = vpack.c.b16 %v978, %v977
        %v1170 = vpack.c.b16 %v980, %v979
        %v1171 = vpack.c.b16 %v982, %v981
        %v1172 = vpack.c.b16 %v984, %v983
        %v1173 = vpack.c.b16 %v986, %v985
        %v1174 = vpack.c.b16 %v988, %v987
        %v1175 = vpack.c.b16 %v990, %v989
        %v1176 = vpack.c.b16 %v992, %v991
        %v1177 = vpack.c.b16 %v994, %v993
        %v1178 = vpack.c.b16 %v996, %v995
        %v1179 = vpack.c.b16 %v998, %v997
        %v1180 = vpack.c.b16 %v1000, %v999
        %v1181 = vpack.c.b16 %v1002, %v1001
        %v1182 = vpack.c.b16 %v1004, %v1003
        %v1183 = vpack.c.b16 %v1006, %v1005
        %v1184 = vpack.c.b16 %v1008, %v1007
        %v1185 = vpack.c.b16 %v1010, %v1009
        %v1186 = vpack.c.b16 %v1012, %v1011
        %v1187 = vpack.c.b16 %v1014, %v1013
        %v1188 = vpack.c.b16 %v1016, %v1015
        %v1189 = vpack.c.b16 %v1018, %v1017
        %v1190 = vpack.c.b16 %v1020, %v1019
        %v1191 = vpack.c.b16 %v1022, %v1021
        %v1192 = vpack.c.b16 %v1024, %v1023
        %v1193 = vpack.c.b16 %v1026, %v1025
        %v1194 = vpack.c.b16 %v1028, %v1027
        %v1195 = vpack.c.b16 %v1030, %v1029
        %v1196 = vpack.c.b16 %v1032, %v1031
        %v1197 = vpack.c.b16 %v1034, %v1033
        %v1198 = vpack.c.b16 %v1036, %v1035
        %v1199 = vpack.c.b16 %v1038, %v1037
        %v1200 = vpack.c.b16 %v1040, %v1039
        %v1201 = vpack.c.b16 %v1042, %v1041
        %v1202 = vpack.c.b16 %v1044, %v1043
        %v1203 = vpack.c.b16 %v1046, %v1045
        %v1204 = vpack.c.b16 %v1048, %v1047
        %v1205 = vpack.c.b16 %v1050, %v1049
        %v1206 = vpack.c.b16 %v1052, %v1051
        %v1207 = vpack.c.b16 %v1054, %v1053
        %v1208 = vpack.c.b16 %v1056, %v1055
        %v1209 = vpack.c.b16 %v1058, %v1057
        %v1210 = vpack.c.b16 %v1060, %v1059
        %v1211 = vpack.c.b16 %v1062, %v1061
        %v1212 = vpack.c.b16 %v1064, %v1063
        %v1213 = vpack.c.b16 %v1066, %v1065
        %v1214 = vpack.c.b16 %v1068, %v1067
        %v1215 = vpack.c.b16 %v1070, %v1069
        %v1216 = vpack.c.b16 %v1072, %v1071
        %vm1217 = vcmask 523264
        %v1219 = vsel %vm1217, %v205, 0
        %v1222 = vsel %vm1217, %v206, 0
        %v1225 = vsel %vm1217, %v207, 0
        %v1228 = vsel %vm1217, %v208, 0
        %v1231 = vsel %vm1217, %v1073, 0
        %v1234 = vsel %vm1217, %v1074, 0
        %v1237 = vsel %vm1217, %v1075, 0
        %v1240 = vsel %vm1217, %v1076, 0
        %v1243 = vsel %vm1217, %v1077, 0
        %v1246 = vsel %vm1217, %v1078, 0
        %v1249 = vsel %vm1217, %v1079, 0
        %v1252 = vsel %vm1217, %v1080, 0
        %v1255 = vsel %vm1217, %v1081, 0
        %v1258 = vsel %vm1217, %v1082, 0
        %v1261 = vsel %vm1217, %v1083, 0
        %v1264 = vsel %vm1217, %v1084, 0
        %v1267 = vsel %vm1217, %v1085, 0
        %v1270 = vsel %vm1217, %v1086, 0
        %v1273 = vsel %vm1217, %v1087, 0
        %v1276 = vsel %vm1217, %v1088, 0
        %v1279 = vsel %vm1217, %v1089, 0
        %v1282 = vsel %vm1217, %v1090, 0
        %v1285 = vsel %vm1217, %v1091, 0
        %v1288 = vsel %vm1217, %v1092, 0
        %v1291 = vsel %vm1217, %v1093, 0
        %v1294 = vsel %vm1217, %v1094, 0
        %v1297 = vsel %vm1217, %v1095, 0
        %v1300 = vsel %vm1217, %v1096, 0
        %v1303 = vsel %vm1217, %v1097, 0
        %v1306 = vsel %vm1217, %v1098, 0
        %v1309 = vsel %vm1217, %v1099, 0
        %v1312 = vsel %vm1217, %v1100, 0
        %v1315 = vsel %vm1217, %v1101, 0
        %v1318 = vsel %vm1217, %v1102, 0
        %v1321 = vsel %vm1217, %v1103, 0
        %v1324 = vsel %vm1217, %v1104, 0
        %v1327 = vsel %vm1217, %v1105, 0
        %v1330 = vsel %vm1217, %v1106, 0
        %v1333 = vsel %vm1217, %v1107, 0
        %v1336 = vsel %vm1217, %v1108, 0
        %v1339 = vsel %vm1217, %v1109, 0
        %v1342 = vsel %vm1217, %v1110, 0
        %v1345 = vsel %vm1217, %v1111, 0
        %v1348 = vsel %vm1217, %v1112, 0
        %v1351 = vsel %vm1217, %v1113, 0
        %v1354 = vsel %vm1217, %v1114, 0
        %v1357 = vsel %vm1217, %v1115, 0
        %v1360 = vsel %vm1217, %v1116, 0
        %v1363 = vsel %vm1217, %v1117, 0
        %v1366 = vsel %vm1217, %v1118, 0
        %v1369 = vsel %vm1217, %v1119, 0
        %v1372 = vsel %vm1217, %v1120, 0
        %v1375 = vsel %vm1217, %v1121, 0
        %v1378 = vsel %vm1217, %v1122, 0
        %v1381 = vsel %vm1217, %v1123, 0
        %v1384 = vsel %vm1217, %v1124, 0
        %v1387 = vsel %vm1217, %v1125, 0
        %v1390 = vsel %vm1217, %v1126, 0
        %v1393 = vsel %vm1217, %v1127, 0
        %v1396 = vsel %vm1217, %v1128, 0
        %v1399 = vsel %vm1217, %v1129, 0
        %v1402 = vsel %vm1217, %v1130, 0
        %v1405 = vsel %vm1217, %v1131, 0
        %v1408 = vsel %vm1217, %v1132, 0
        %v1411 = vsel %vm1217, %v1133, 0
        %v1414 = vsel %vm1217, %v1134, 0
        %v1417 = vsel %vm1217, %v1135, 0
        %v1420 = vsel %vm1217, %v1136, 0
        %v1423 = vsel %vm1217, %v1137, 0
        %v1426 = vsel %vm1217, %v1138, 0
        %v1429 = vsel %vm1217, %v1139, 0
        %v1432 = vsel %vm1217, %v1140, 0
        %v1435 = vsel %vm1217, %v1141, 0
        %v1438 = vsel %vm1217, %v1142, 0
        %v1441 = vsel %vm1217, %v1143, 0
        %v1444 = vsel %vm1217, %v1144, 0
        %v1447 = vsel %vm1217, %v1145, 0
        %v1450 = vsel %vm1217, %v1146, 0
        %v1453 = vsel %vm1217, %v1147, 0
        %v1456 = vsel %vm1217, %v1148, 0
        %v1459 = vsel %vm1217, %v1149, 0
        %v1462 = vsel %vm1217, %v1150, 0
        %v1465 = vsel %vm1217, %v1151, 0
        %v1468 = vsel %vm1217, %v1152, 0
        %v1471 = vsel %vm1217, %v1153, 0
        %v1474 = vsel %vm1217, %v1154, 0
        %v1477 = vsel %vm1217, %v1155, 0
        %v1480 = vsel %vm1217, %v1156, 0
        %v1483 = vsel %vm1217, %v1157, 0
        %v1486 = vsel %vm1217, %v1158, 0
        %v1489 = vsel %vm1217, %v1159, 0
        %v1492 = vsel %vm1217, %v1160, 0
        %v1495 = vsel %vm1217, %v1161, 0
        %v1498 = vsel %vm1217, %v1162, 0
        %v1501 = vsel %vm1217, %v1163, 0
        %v1504 = vsel %vm1217, %v1164, 0
        %v1507 = vsel %vm1217, %v1165, 0
        %v1510 = vsel %vm1217, %v1166, 0
        %v1513 = vsel %vm1217, %v1167, 0
        %v1516 = vsel %vm1217, %v1168, 0
        %v1519 = vsel %vm1217, %v1169, 0
        %v1522 = vsel %vm1217, %v1170, 0
        %v1525 = vsel %vm1217, %v1171, 0
        %v1528 = vsel %vm1217, %v1172, 0
        %v1531 = vsel %vm1217, %v1173, 0
        %v1534 = vsel %vm1217, %v1174, 0
        %v1537 = vsel %vm1217, %v1175, 0
        %v1540 = vsel %vm1217, %v1176, 0
        %v1543 = vsel %vm1217, %v1177, 0
        %v1546 = vsel %vm1217, %v1178, 0
        %v1549 = vsel %vm1217, %v1179, 0
        %v1552 = vsel %vm1217, %v1180, 0
        %v1555 = vsel %vm1217, %v1181, 0
        %v1558 = vsel %vm1217, %v1182, 0
        %v1561 = vsel %vm1217, %v1183, 0
        %v1564 = vsel %vm1217, %v1184, 0
        %v1567 = vsel %vm1217, %v1185, 0
        %v1570 = vsel %vm1217, %v1186, 0
        %v1573 = vsel %vm1217, %v1187, 0
        %v1576 = vsel %vm1217, %v1188, 0
        %v1579 = vsel %vm1217, %v1189, 0
        %v1582 = vsel %vm1217, %v1190, 0
        %v1585 = vsel %vm1217, %v1191, 0
        %v1588 = vsel %vm1217, %v1192, 0
        %v1591 = vsel %vm1217, %v1193, 0
        %v1594 = vsel %vm1217, %v1194, 0
        %v1597 = vsel %vm1217, %v1195, 0
        %v1600 = vsel %vm1217, %v1196, 0
        %v1603 = vsel %vm1217, %v1197, 0
        %v1606 = vsel %vm1217, %v1198, 0
        %v1609 = vsel %vm1217, %v1199, 0
        %v1612 = vsel %vm1217, %v1200, 0
        %v1615 = vsel %vm1217, %v1201, 0
        %v1618 = vsel %vm1217, %v1202, 0
        %v1621 = vsel %vm1217, %v1203, 0
        %v1624 = vsel %vm1217, %v1204, 0
        %v1627 = vsel %vm1217, %v1205, 0
        %v1630 = vsel %vm1217, %v1206, 0
        %v1633 = vsel %vm1217, %v1207, 0
        %v1636 = vsel %vm1217, %v1208, 0
        %v1639 = vsel %vm1217, %v1209, 0
        %v1642 = vsel %vm1217, %v1210, 0
        %v1645 = vsel %vm1217, %v1211, 0
        %v1648 = vsel %vm1217, %v1212, 0
        %v1651 = vsel %vm1217, %v1213, 0
        %v1654 = vsel %vm1217, %v1214, 0
        %v1657 = vsel %vm1217, %v1215, 0
        %v1660 = vsel %vm1217, %v1216, 0
        %1662 = vmatprep.subr.bf16.mxu0 0
        %1663 = vmatpush1.bf16.xpose.msra.mxu0 %v1231
        %1664 = vmatprep.subr.bf16.mxu0 0
        %1665 = vmatpush1.bf16.xpose.msra.mxu0 %v1234
        %1666 = vmatprep.subr.bf16.mxu0 0
        %1667 = vmatpush1.bf16.xpose.msra.mxu0 %v1237
        %1668 = vmatprep.subr.bf16.mxu0 0
        %1669 = vmatpush1.bf16.xpose.msra.mxu0 %v1240
        %1670 = vmatprep.subr.bf16.mxu0 0
        %1671 = vmatpush1.bf16.xpose.msra.mxu0 %v1243
        %1672 = vmatprep.subr.bf16.mxu0 0
        %1673 = vmatpush1.bf16.xpose.msra.mxu0 %v1246
        %1674 = vmatprep.subr.bf16.mxu0 0
        %1675 = vmatpush1.bf16.xpose.msra.mxu0 %v1249
        %1676 = vmatprep.subr.bf16.mxu0 0
        %1677 = vmatpush1.bf16.xpose.msra.mxu0 %v1252
        %1678 = vmatprep.subr.bf16.mxu0 0
        %1679 = vmatpush1.bf16.xpose.msra.mxu0 %v1255
        %1680 = vmatprep.subr.bf16.mxu0 0
        %1681 = vmatpush1.bf16.xpose.msra.mxu0 %v1258
        %1682 = vmatprep.subr.bf16.mxu0 0
        %1683 = vmatpush1.bf16.xpose.msra.mxu0 %v1261
        %1684 = vmatprep.subr.bf16.mxu0 0
        %1685 = vmatpush1.bf16.xpose.msra.mxu0 %v1264
        %1686 = vmatprep.subr.bf16.mxu0 0
        %1687 = vmatpush1.bf16.xpose.msra.mxu0 %v1267
        %1688 = vmatprep.subr.bf16.mxu0 0
        %1689 = vmatpush1.bf16.xpose.msra.mxu0 %v1270
        %1690 = vmatprep.subr.bf16.mxu0 0
        %1691 = vmatpush1.bf16.xpose.msra.mxu0 %v1273
        %1692 = vmatprep.subr.bf16.mxu0 0
        %1693 = vmatpush1.bf16.xpose.msra.mxu0 %v1276
        %1694 = vmatprep.mubr.bf16.mxu0 0
        %1695 = vmatmul.mubr.bf16.gmra.mrb[0].mxu0 %v1219
        %v1696 = vpop.f32.mrb[0].mxu0
        %v1697 = vadd.f32 0.0, %v1696
        %v1698 = vpop.f32.mrb[0].mxu0
        %v1699 = vadd.f32 0.0, %v1698
        %v1700 = vpop.f32.mrb[0].mxu0
        %v1701 = vadd.f32 0.0, %v1700
        %v1702 = vpop.f32.mrb[0].mxu0
        %v1703 = vadd.f32 0.0, %v1702
        %1704 = vmatprep.mubr.bf16.mxu0 0
        %1705 = vmatmul.mubr.bf16.gmra.mrb[0].mxu0 %v1222
        %v1706 = vpop.f32.mrb[0].mxu0
        %v1707 = vadd.f32 0.0, %v1706
        %v1708 = vpop.f32.mrb[0].mxu0
        %v1709 = vadd.f32 0.0, %v1708
        %v1710 = vpop.f32.mrb[0].mxu0
        %v1711 = vadd.f32 0.0, %v1710
        %v1712 = vpop.f32.mrb[0].mxu0
        %v1713 = vadd.f32 0.0, %v1712
        %1714 = vmatprep.mubr.bf16.mxu0 0
        %1715 = vmatmul.mubr.bf16.gmra.mrb[0].mxu0 %v1225
        %v1716 = vpop.f32.mrb[0].mxu0
        %v1717 = vadd.f32 0.0, %v1716
        %v1718 = vpop.f32.mrb[0].mxu0
        %v1719 = vadd.f32 0.0, %v1718
        %v1720 = vpop.f32.mrb[0].mxu0
        %v1721 = vadd.f32 0.0, %v1720
        %v1722 = vpop.f32.mrb[0].mxu0
        %v1723 = vadd.f32 0.0, %v1722
        %1724 = vmatprep.mubr.bf16.mxu0 0
        %1725 = vmatmul.mubr.bf16.gmra.mrb[0].mxu0 %v1228
        %v1726 = vpop.f32.mrb[0].mxu0
        %v1727 = vadd.f32 0.0, %v1726
        %v1728 = vpop.f32.mrb[0].mxu0
        %v1729 = vadd.f32 0.0, %v1728
        %v1730 = vpop.f32.mrb[0].mxu0
        %v1731 = vadd.f32 0.0, %v1730
        %v1732 = vpop.f32.mrb[0].mxu0
        %v1733 = vadd.f32 0.0, %v1732
        %1734 = vdwg.mxu0
        %1735 = vmatprep.subr.bf16.mxu0 0
        %1736 = vmatpush1.bf16.xpose.msra.mxu0 %v1279
        %1737 = vmatprep.subr.bf16.mxu0 0
        %1738 = vmatpush1.bf16.xpose.msra.mxu0 %v1282
        %1739 = vmatprep.subr.bf16.mxu0 0
        %1740 = vmatpush1.bf16.xpose.msra.mxu0 %v1285
        %1741 = vmatprep.subr.bf16.mxu0 0
        %1742 = vmatpush1.bf16.xpose.msra.mxu0 %v1288
        %1743 = vmatprep.subr.bf16.mxu0 0
        %1744 = vmatpush1.bf16.xpose.msra.mxu0 %v1291
        %1745 = vmatprep.subr.bf16.mxu0 0
        %1746 = vmatpush1.bf16.xpose.msra.mxu0 %v1294
        %1747 = vmatprep.subr.bf16.mxu0 0
        %1748 = vmatpush1.bf16.xpose.msra.mxu0 %v1297
        %1749 = vmatprep.subr.bf16.mxu0 0
        %1750 = vmatpush1.bf16.xpose.msra.mxu0 %v1300
        %1751 = vmatprep.subr.bf16.mxu0 0
        %1752 = vmatpush1.bf16.xpose.msra.mxu0 %v1303
        %1753 = vmatprep.subr.bf16.mxu0 0
        %1754 = vmatpush1.bf16.xpose.msra.mxu0 %v1306
        %1755 = vmatprep.subr.bf16.mxu0 0
        %1756 = vmatpush1.bf16.xpose.msra.mxu0 %v1309
        %1757 = vmatprep.subr.bf16.mxu0 0
        %1758 = vmatpush1.bf16.xpose.msra.mxu0 %v1312
        %1759 = vmatprep.subr.bf16.mxu0 0
        %1760 = vmatpush1.bf16.xpose.msra.mxu0 %v1315
        %1761 = vmatprep.subr.bf16.mxu0 0
        %1762 = vmatpush1.bf16.xpose.msra.mxu0 %v1318
        %1763 = vmatprep.subr.bf16.mxu0 0
        %1764 = vmatpush1.bf16.xpose.msra.mxu0 %v1321
        %1765 = vmatprep.subr.bf16.mxu0 0
        %1766 = vmatpush1.bf16.xpose.msra.mxu0 %v1324
        %1767 = vmatprep.mubr.bf16.mxu0 0
        %1768 = vmatmul.mubr.bf16.gmra.mrb[0].mxu0 %v1219
        %v1769 = vpop.f32.mrb[0].mxu0
        %v1770 = vadd.f32 0.0, %v1769
        %v1771 = vpop.f32.mrb[0].mxu0
        %v1772 = vadd.f32 0.0, %v1771
        %v1773 = vpop.f32.mrb[0].mxu0
        %v1774 = vadd.f32 0.0, %v1773
        %v1775 = vpop.f32.mrb[0].mxu0
        %v1776 = vadd.f32 0.0, %v1775
        %1777 = vmatprep.mubr.bf16.mxu0 0
        %1778 = vmatmul.mubr.bf16.gmra.mrb[0].mxu0 %v1222
        %v1779 = vpop.f32.mrb[0].mxu0
        %v1780 = vadd.f32 0.0, %v1779
        %v1781 = vpop.f32.mrb[0].mxu0
        %v1782 = vadd.f32 0.0, %v1781
        %v1783 = vpop.f32.mrb[0].mxu0
        %v1784 = vadd.f32 0.0, %v1783
        %v1785 = vpop.f32.mrb[0].mxu0
        %v1786 = vadd.f32 0.0, %v1785
        %1787 = vmatprep.mubr.bf16.mxu0 0
        %1788 = vmatmul.mubr.bf16.gmra.mrb[0].mxu0 %v1225
        %v1789 = vpop.f32.mrb[0].mxu0
        %v1790 = vadd.f32 0.0, %v1789
        %v1791 = vpop.f32.mrb[0].mxu0
        %v1792 = vadd.f32 0.0, %v1791
        %v1793 = vpop.f32.mrb[0].mxu0
        %v1794 = vadd.f32 0.0, %v1793
        %v1795 = vpop.f32.mrb[0].mxu0
        %v1796 = vadd.f32 0.0, %v1795
        %1797 = vmatprep.mubr.bf16.mxu0 0
        %1798 = vmatmul.mubr.bf16.gmra.mrb[0].mxu0 %v1228
        %v1799 = vpop.f32.mrb[0].mxu0
        %v1800 = vadd.f32 0.0, %v1799
        %v1801 = vpop.f32.mrb[0].mxu0
        %v1802 = vadd.f32 0.0, %v1801
        %v1803 = vpop.f32.mrb[0].mxu0
        %v1804 = vadd.f32 0.0, %v1803
        %v1805 = vpop.f32.mrb[0].mxu0
        %v1806 = vadd.f32 0.0, %v1805
        %1807 = vdwg.mxu0
        %1808 = vmatprep.subr.bf16.mxu0 0
        %1809 = vmatpush1.bf16.xpose.msra.mxu0 %v1327
        %1810 = vmatprep.subr.bf16.mxu0 0
        %1811 = vmatpush1.bf16.xpose.msra.mxu0 %v1330
        %1812 = vmatprep.subr.bf16.mxu0 0
        %1813 = vmatpush1.bf16.xpose.msra.mxu0 %v1333
        %1814 = vmatprep.subr.bf16.mxu0 0
        %1815 = vmatpush1.bf16.xpose.msra.mxu0 %v1336
        %1816 = vmatprep.subr.bf16.mxu0 0
        %1817 = vmatpush1.bf16.xpose.msra.mxu0 %v1339
        %1818 = vmatprep.subr.bf16.mxu0 0
        %1819 = vmatpush1.bf16.xpose.msra.mxu0 %v1342
        %1820 = vmatprep.subr.bf16.mxu0 0
        %1821 = vmatpush1.bf16.xpose.msra.mxu0 %v1345
        %1822 = vmatprep.subr.bf16.mxu0 0
        %1823 = vmatpush1.bf16.xpose.msra.mxu0 %v1348
        %1824 = vmatprep.subr.bf16.mxu0 0
        %1825 = vmatpush1.bf16.xpose.msra.mxu0 %v1351
        %1826 = vmatprep.subr.bf16.mxu0 0
        %1827 = vmatpush1.bf16.xpose.msra.mxu0 %v1354
        %1828 = vmatprep.subr.bf16.mxu0 0
        %1829 = vmatpush1.bf16.xpose.msra.mxu0 %v1357
        %1830 = vmatprep.subr.bf16.mxu0 0
        %1831 = vmatpush1.bf16.xpose.msra.mxu0 %v1360
        %1832 = vmatprep.subr.bf16.mxu0 0
        %1833 = vmatpush1.bf16.xpose.msra.mxu0 %v1363
        %1834 = vmatprep.subr.bf16.mxu0 0
        %1835 = vmatpush1.bf16.xpose.msra.mxu0 %v1366
        %1836 = vmatprep.subr.bf16.mxu0 0
        %1837 = vmatpush1.bf16.xpose.msra.mxu0 %v1369
        %1838 = vmatprep.subr.bf16.mxu0 0
        %1839 = vmatpush1.bf16.xpose.msra.mxu0 %v1372
        %1840 = vmatprep.mubr.bf16.mxu0 0
        %1841 = vmatmul.mubr.bf16.gmra.mrb[0].mxu0 %v1219
        %v1842 = vpop.f32.mrb[0].mxu0
        %v1843 = vadd.f32 0.0, %v1842
        %v1844 = vpop.f32.mrb[0].mxu0
        %v1845 = vadd.f32 0.0, %v1844
        %v1846 = vpop.f32.mrb[0].mxu0
        %v1847 = vadd.f32 0.0, %v1846
        %v1848 = vpop.f32.mrb[0].mxu0
        %v1849 = vadd.f32 0.0, %v1848
        %1850 = vmatprep.mubr.bf16.mxu0 0
        %1851 = vmatmul.mubr.bf16.gmra.mrb[0].mxu0 %v1222
        %v1852 = vpop.f32.mrb[0].mxu0
        %v1853 = vadd.f32 0.0, %v1852
        %v1854 = vpop.f32.mrb[0].mxu0
        %v1855 = vadd.f32 0.0, %v1854
        %v1856 = vpop.f32.mrb[0].mxu0
        %v1857 = vadd.f32 0.0, %v1856
        %v1858 = vpop.f32.mrb[0].mxu0
        %v1859 = vadd.f32 0.0, %v1858
        %1860 = vmatprep.mubr.bf16.mxu0 0
        %1861 = vmatmul.mubr.bf16.gmra.mrb[0].mxu0 %v1225
        %v1862 = vpop.f32.mrb[0].mxu0
        %v1863 = vadd.f32 0.0, %v1862
        %v1864 = vpop.f32.mrb[0].mxu0
        %v1865 = vadd.f32 0.0, %v1864
        %v1866 = vpop.f32.mrb[0].mxu0
        %v1867 = vadd.f32 0.0, %v1866
        %v1868 = vpop.f32.mrb[0].mxu0
        %v1869 = vadd.f32 0.0, %v1868
        %1870 = vmatprep.mubr.bf16.mxu0 0
        %1871 = vmatmul.mubr.bf16.gmra.mrb[0].mxu0 %v1228
        %v1872 = vpop.f32.mrb[0].mxu0
        %v1873 = vadd.f32 0.0, %v1872
        %v1874 = vpop.f32.mrb[0].mxu0
        %v1875 = vadd.f32 0.0, %v1874
        %v1876 = vpop.f32.mrb[0].mxu0
        %v1877 = vadd.f32 0.0, %v1876
        %v1878 = vpop.f32.mrb[0].mxu0
        %v1879 = vadd.f32 0.0, %v1878
        %1880 = vdwg.mxu0
        %1881 = vmatprep.subr.bf16.mxu0 0
        %1882 = vmatpush1.bf16.xpose.msra.mxu0 %v1375
        %1883 = vmatprep.subr.bf16.mxu0 0
        %1884 = vmatpush1.bf16.xpose.msra.mxu0 %v1378
        %1885 = vmatprep.subr.bf16.mxu0 0
        %1886 = vmatpush1.bf16.xpose.msra.mxu0 %v1381
        %1887 = vmatprep.subr.bf16.mxu0 0
        %1888 = vmatpush1.bf16.xpose.msra.mxu0 %v1384
        %1889 = vmatprep.subr.bf16.mxu0 0
        %1890 = vmatpush1.bf16.xpose.msra.mxu0 %v1387
        %1891 = vmatprep.subr.bf16.mxu0 0
        %1892 = vmatpush1.bf16.xpose.msra.mxu0 %v1390
        %1893 = vmatprep.subr.bf16.mxu0 0
        %1894 = vmatpush1.bf16.xpose.msra.mxu0 %v1393
        %1895 = vmatprep.subr.bf16.mxu0 0
        %1896 = vmatpush1.bf16.xpose.msra.mxu0 %v1396
        %1897 = vmatprep.subr.bf16.mxu0 0
        %1898 = vmatpush1.bf16.xpose.msra.mxu0 %v1399
        %1899 = vmatprep.subr.bf16.mxu0 0
        %1900 = vmatpush1.bf16.xpose.msra.mxu0 %v1402
        %1901 = vmatprep.subr.bf16.mxu0 0
        %1902 = vmatpush1.bf16.xpose.msra.mxu0 %v1405
        %1903 = vmatprep.subr.bf16.mxu0 0
        %1904 = vmatpush1.bf16.xpose.msra.mxu0 %v1408
        %1905 = vmatprep.subr.bf16.mxu0 0
        %1906 = vmatpush1.bf16.xpose.msra.mxu0 %v1411
        %1907 = vmatprep.subr.bf16.mxu0 0
        %1908 = vmatpush1.bf16.xpose.msra.mxu0 %v1414
        %1909 = vmatprep.subr.bf16.mxu0 0
        %1910 = vmatpush1.bf16.xpose.msra.mxu0 %v1417
        %1911 = vmatprep.subr.bf16.mxu0 0
        %1912 = vmatpush1.bf16.xpose.msra.mxu0 %v1420
        %1913 = vmatprep.mubr.bf16.mxu0 0
        %1914 = vmatmul.mubr.bf16.gmra.mrb[0].mxu0 %v1219
        %v1915 = vpop.f32.mrb[0].mxu0
        %v1916 = vadd.f32 0.0, %v1915
        %v1917 = vpop.f32.mrb[0].mxu0
        %v1918 = vadd.f32 0.0, %v1917
        %v1919 = vpop.f32.mrb[0].mxu0
        %v1920 = vadd.f32 0.0, %v1919
        %v1921 = vpop.f32.mrb[0].mxu0
        %v1922 = vadd.f32 0.0, %v1921
        %1923 = vmatprep.mubr.bf16.mxu0 0
        %1924 = vmatmul.mubr.bf16.gmra.mrb[0].mxu0 %v1222
        %v1925 = vpop.f32.mrb[0].mxu0
        %v1926 = vadd.f32 0.0, %v1925
        %v1927 = vpop.f32.mrb[0].mxu0
        %v1928 = vadd.f32 0.0, %v1927
        %v1929 = vpop.f32.mrb[0].mxu0
        %v1930 = vadd.f32 0.0, %v1929
        %v1931 = vpop.f32.mrb[0].mxu0
        %v1932 = vadd.f32 0.0, %v1931
        %1933 = vmatprep.mubr.bf16.mxu0 0
        %1934 = vmatmul.mubr.bf16.gmra.mrb[0].mxu0 %v1225
        %v1935 = vpop.f32.mrb[0].mxu0
        %v1936 = vadd.f32 0.0, %v1935
        %v1937 = vpop.f32.mrb[0].mxu0
        %v1938 = vadd.f32 0.0, %v1937
        %v1939 = vpop.f32.mrb[0].mxu0
        %v1940 = vadd.f32 0.0, %v1939
        %v1941 = vpop.f32.mrb[0].mxu0
        %v1942 = vadd.f32 0.0, %v1941
        %1943 = vmatprep.mubr.bf16.mxu0 0
        %1944 = vmatmul.mubr.bf16.gmra.mrb[0].mxu0 %v1228
        %v1945 = vpop.f32.mrb[0].mxu0
        %v1946 = vadd.f32 0.0, %v1945
        %v1947 = vpop.f32.mrb[0].mxu0
        %v1948 = vadd.f32 0.0, %v1947
        %v1949 = vpop.f32.mrb[0].mxu0
        %v1950 = vadd.f32 0.0, %v1949
        %v1951 = vpop.f32.mrb[0].mxu0
        %v1952 = vadd.f32 0.0, %v1951
        %1953 = vdwg.mxu0
        %1954 = vmatprep.subr.bf16.mxu0 0
        %1955 = vmatpush1.bf16.xpose.msra.mxu0 %v1423
        %1956 = vmatprep.subr.bf16.mxu0 0
        %1957 = vmatpush1.bf16.xpose.msra.mxu0 %v1426
        %1958 = vmatprep.subr.bf16.mxu0 0
        %1959 = vmatpush1.bf16.xpose.msra.mxu0 %v1429
        %1960 = vmatprep.subr.bf16.mxu0 0
        %1961 = vmatpush1.bf16.xpose.msra.mxu0 %v1432
        %1962 = vmatprep.subr.bf16.mxu0 0
        %1963 = vmatpush1.bf16.xpose.msra.mxu0 %v1435
        %1964 = vmatprep.subr.bf16.mxu0 0
        %1965 = vmatpush1.bf16.xpose.msra.mxu0 %v1438
        %1966 = vmatprep.subr.bf16.mxu0 0
        %1967 = vmatpush1.bf16.xpose.msra.mxu0 %v1441
        %1968 = vmatprep.subr.bf16.mxu0 0
        %1969 = vmatpush1.bf16.xpose.msra.mxu0 %v1444
        %1970 = vmatprep.subr.bf16.mxu0 0
        %1971 = vmatpush1.bf16.xpose.msra.mxu0 %v1447
        %1972 = vmatprep.subr.bf16.mxu0 0
        %1973 = vmatpush1.bf16.xpose.msra.mxu0 %v1450
        %1974 = vmatprep.subr.bf16.mxu0 0
        %1975 = vmatpush1.bf16.xpose.msra.mxu0 %v1453
        %1976 = vmatprep.subr.bf16.mxu0 0
        %1977 = vmatpush1.bf16.xpose.msra.mxu0 %v1456
        %1978 = vmatprep.subr.bf16.mxu0 0
        %1979 = vmatpush1.bf16.xpose.msra.mxu0 %v1459
        %1980 = vmatprep.subr.bf16.mxu0 0
        %1981 = vmatpush1.bf16.xpose.msra.mxu0 %v1462
        %1982 = vmatprep.subr.bf16.mxu0 0
        %1983 = vmatpush1.bf16.xpose.msra.mxu0 %v1465
        %1984 = vmatprep.subr.bf16.mxu0 0
        %1985 = vmatpush1.bf16.xpose.msra.mxu0 %v1468
        %1986 = vmatprep.mubr.bf16.mxu0 0
        %1987 = vmatmul.mubr.bf16.gmra.mrb[0].mxu0 %v1219
        %v1988 = vpop.f32.mrb[0].mxu0
        %v1989 = vadd.f32 0.0, %v1988
        %v1990 = vpop.f32.mrb[0].mxu0
        %v1991 = vadd.f32 0.0, %v1990
        %v1992 = vpop.f32.mrb[0].mxu0
        %v1993 = vadd.f32 0.0, %v1992
        %v1994 = vpop.f32.mrb[0].mxu0
        %v1995 = vadd.f32 0.0, %v1994
        %1996 = vmatprep.mubr.bf16.mxu0 0
        %1997 = vmatmul.mubr.bf16.gmra.mrb[0].mxu0 %v1222
        %v1998 = vpop.f32.mrb[0].mxu0
        %v1999 = vadd.f32 0.0, %v1998
        %v2000 = vpop.f32.mrb[0].mxu0
        %v2001 = vadd.f32 0.0, %v2000
        %v2002 = vpop.f32.mrb[0].mxu0
        %v2003 = vadd.f32 0.0, %v2002
        %v2004 = vpop.f32.mrb[0].mxu0
        %v2005 = vadd.f32 0.0, %v2004
        %2006 = vmatprep.mubr.bf16.mxu0 0
        %2007 = vmatmul.mubr.bf16.gmra.mrb[0].mxu0 %v1225
        %v2008 = vpop.f32.mrb[0].mxu0
        %v2009 = vadd.f32 0.0, %v2008
        %v2010 = vpop.f32.mrb[0].mxu0
        %v2011 = vadd.f32 0.0, %v2010
        %v2012 = vpop.f32.mrb[0].mxu0
        %v2013 = vadd.f32 0.0, %v2012
        %v2014 = vpop.f32.mrb[0].mxu0
        %v2015 = vadd.f32 0.0, %v2014
        %2016 = vmatprep.mubr.bf16.mxu0 0
        %2017 = vmatmul.mubr.bf16.gmra.mrb[0].mxu0 %v1228
        %v2018 = vpop.f32.mrb[0].mxu0
        %v2019 = vadd.f32 0.0, %v2018
        %v2020 = vpop.f32.mrb[0].mxu0
        %v2021 = vadd.f32 0.0, %v2020
        %v2022 = vpop.f32.mrb[0].mxu0
        %v2023 = vadd.f32 0.0, %v2022
        %v2024 = vpop.f32.mrb[0].mxu0
        %v2025 = vadd.f32 0.0, %v2024
        %2026 = vdwg.mxu0
        %2027 = vmatprep.subr.bf16.mxu0 0
        %2028 = vmatpush1.bf16.xpose.msra.mxu0 %v1471
        %2029 = vmatprep.subr.bf16.mxu0 0
        %2030 = vmatpush1.bf16.xpose.msra.mxu0 %v1474
        %2031 = vmatprep.subr.bf16.mxu0 0
        %2032 = vmatpush1.bf16.xpose.msra.mxu0 %v1477
        %2033 = vmatprep.subr.bf16.mxu0 0
        %2034 = vmatpush1.bf16.xpose.msra.mxu0 %v1480
        %2035 = vmatprep.subr.bf16.mxu0 0
        %2036 = vmatpush1.bf16.xpose.msra.mxu0 %v1483
        %2037 = vmatprep.subr.bf16.mxu0 0
        %2038 = vmatpush1.bf16.xpose.msra.mxu0 %v1486
        %2039 = vmatprep.subr.bf16.mxu0 0
        %2040 = vmatpush1.bf16.xpose.msra.mxu0 %v1489
        %2041 = vmatprep.subr.bf16.mxu0 0
        %2042 = vmatpush1.bf16.xpose.msra.mxu0 %v1492
        %2043 = vmatprep.subr.bf16.mxu0 0
        %2044 = vmatpush1.bf16.xpose.msra.mxu0 %v1495
        %2045 = vmatprep.subr.bf16.mxu0 0
        %2046 = vmatpush1.bf16.xpose.msra.mxu0 %v1498
        %2047 = vmatprep.subr.bf16.mxu0 0
        %2048 = vmatpush1.bf16.xpose.msra.mxu0 %v1501
        %2049 = vmatprep.subr.bf16.mxu0 0
        %2050 = vmatpush1.bf16.xpose.msra.mxu0 %v1504
        %2051 = vmatprep.subr.bf16.mxu0 0
        %2052 = vmatpush1.bf16.xpose.msra.mxu0 %v1507
        %2053 = vmatprep.subr.bf16.mxu0 0
        %2054 = vmatpush1.bf16.xpose.msra.mxu0 %v1510
        %2055 = vmatprep.subr.bf16.mxu0 0
        %2056 = vmatpush1.bf16.xpose.msra.mxu0 %v1513
        %2057 = vmatprep.subr.bf16.mxu0 0
        %2058 = vmatpush1.bf16.xpose.msra.mxu0 %v1516
        %2059 = vmatprep.mubr.bf16.mxu0 0
        %2060 = vmatmul.mubr.bf16.gmra.mrb[0].mxu0 %v1219
        %v2061 = vpop.f32.mrb[0].mxu0
        %v2062 = vadd.f32 0.0, %v2061
        %v2063 = vpop.f32.mrb[0].mxu0
        %v2064 = vadd.f32 0.0, %v2063
        %v2065 = vpop.f32.mrb[0].mxu0
        %v2066 = vadd.f32 0.0, %v2065
        %v2067 = vpop.f32.mrb[0].mxu0
        %v2068 = vadd.f32 0.0, %v2067
        %2069 = vmatprep.mubr.bf16.mxu0 0
        %2070 = vmatmul.mubr.bf16.gmra.mrb[0].mxu0 %v1222
        %v2071 = vpop.f32.mrb[0].mxu0
        %v2072 = vadd.f32 0.0, %v2071
        %v2073 = vpop.f32.mrb[0].mxu0
        %v2074 = vadd.f32 0.0, %v2073
        %v2075 = vpop.f32.mrb[0].mxu0
        %v2076 = vadd.f32 0.0, %v2075
        %v2077 = vpop.f32.mrb[0].mxu0
        %v2078 = vadd.f32 0.0, %v2077
        %2079 = vmatprep.mubr.bf16.mxu0 0
        %2080 = vmatmul.mubr.bf16.gmra.mrb[0].mxu0 %v1225
        %v2081 = vpop.f32.mrb[0].mxu0
        %v2082 = vadd.f32 0.0, %v2081
        %v2083 = vpop.f32.mrb[0].mxu0
        %v2084 = vadd.f32 0.0, %v2083
        %v2085 = vpop.f32.mrb[0].mxu0
        %v2086 = vadd.f32 0.0, %v2085
        %v2087 = vpop.f32.mrb[0].mxu0
        %v2088 = vadd.f32 0.0, %v2087
        %2089 = vmatprep.mubr.bf16.mxu0 0
        %2090 = vmatmul.mubr.bf16.gmra.mrb[0].mxu0 %v1228
        %v2091 = vpop.f32.mrb[0].mxu0
        %v2092 = vadd.f32 0.0, %v2091
        %v2093 = vpop.f32.mrb[0].mxu0
        %v2094 = vadd.f32 0.0, %v2093
        %v2095 = vpop.f32.mrb[0].mxu0
        %v2096 = vadd.f32 0.0, %v2095
        %v2097 = vpop.f32.mrb[0].mxu0
        %v2098 = vadd.f32 0.0, %v2097
        %2099 = vdwg.mxu0
        %2100 = vmatprep.subr.bf16.mxu0 0
        %2101 = vmatpush1.bf16.xpose.msra.mxu0 %v1519
        %2102 = vmatprep.subr.bf16.mxu0 0
        %2103 = vmatpush1.bf16.xpose.msra.mxu0 %v1522
        %2104 = vmatprep.subr.bf16.mxu0 0
        %2105 = vmatpush1.bf16.xpose.msra.mxu0 %v1525
        %2106 = vmatprep.subr.bf16.mxu0 0
        %2107 = vmatpush1.bf16.xpose.msra.mxu0 %v1528
        %2108 = vmatprep.subr.bf16.mxu0 0
        %2109 = vmatpush1.bf16.xpose.msra.mxu0 %v1531
        %2110 = vmatprep.subr.bf16.mxu0 0
        %2111 = vmatpush1.bf16.xpose.msra.mxu0 %v1534
        %2112 = vmatprep.subr.bf16.mxu0 0
        %2113 = vmatpush1.bf16.xpose.msra.mxu0 %v1537
        %2114 = vmatprep.subr.bf16.mxu0 0
        %2115 = vmatpush1.bf16.xpose.msra.mxu0 %v1540
        %2116 = vmatprep.subr.bf16.mxu0 0
        %2117 = vmatpush1.bf16.xpose.msra.mxu0 %v1543
        %2118 = vmatprep.subr.bf16.mxu0 0
        %2119 = vmatpush1.bf16.xpose.msra.mxu0 %v1546
        %2120 = vmatprep.subr.bf16.mxu0 0
        %2121 = vmatpush1.bf16.xpose.msra.mxu0 %v1549
        %2122 = vmatprep.subr.bf16.mxu0 0
        %2123 = vmatpush1.bf16.xpose.msra.mxu0 %v1552
        %2124 = vmatprep.subr.bf16.mxu0 0
        %2125 = vmatpush1.bf16.xpose.msra.mxu0 %v1555
        %2126 = vmatprep.subr.bf16.mxu0 0
        %2127 = vmatpush1.bf16.xpose.msra.mxu0 %v1558
        %2128 = vmatprep.subr.bf16.mxu0 0
        %2129 = vmatpush1.bf16.xpose.msra.mxu0 %v1561
        %2130 = vmatprep.subr.bf16.mxu0 0
        %2131 = vmatpush1.bf16.xpose.msra.mxu0 %v1564
        %2132 = vmatprep.mubr.bf16.mxu0 0
        %2133 = vmatmul.mubr.bf16.gmra.mrb[0].mxu0 %v1219
        %v2134 = vpop.f32.mrb[0].mxu0
        %v2135 = vadd.f32 0.0, %v2134
        %v2136 = vpop.f32.mrb[0].mxu0
        %v2137 = vadd.f32 0.0, %v2136
        %v2138 = vpop.f32.mrb[0].mxu0
        %v2139 = vadd.f32 0.0, %v2138
        %v2140 = vpop.f32.mrb[0].mxu0
        %v2141 = vadd.f32 0.0, %v2140
        %2142 = vmatprep.mubr.bf16.mxu0 0
        %2143 = vmatmul.mubr.bf16.gmra.mrb[0].mxu0 %v1222
        %v2144 = vpop.f32.mrb[0].mxu0
        %v2145 = vadd.f32 0.0, %v2144
        %v2146 = vpop.f32.mrb[0].mxu0
        %v2147 = vadd.f32 0.0, %v2146
        %v2148 = vpop.f32.mrb[0].mxu0
        %v2149 = vadd.f32 0.0, %v2148
        %v2150 = vpop.f32.mrb[0].mxu0
        %v2151 = vadd.f32 0.0, %v2150
        %2152 = vmatprep.mubr.bf16.mxu0 0
        %2153 = vmatmul.mubr.bf16.gmra.mrb[0].mxu0 %v1225
        %v2154 = vpop.f32.mrb[0].mxu0
        %v2155 = vadd.f32 0.0, %v2154
        %v2156 = vpop.f32.mrb[0].mxu0
        %v2157 = vadd.f32 0.0, %v2156
        %v2158 = vpop.f32.mrb[0].mxu0
        %v2159 = vadd.f32 0.0, %v2158
        %v2160 = vpop.f32.mrb[0].mxu0
        %v2161 = vadd.f32 0.0, %v2160
        %2162 = vmatprep.mubr.bf16.mxu0 0
        %2163 = vmatmul.mubr.bf16.gmra.mrb[0].mxu0 %v1228
        %v2164 = vpop.f32.mrb[0].mxu0
        %v2165 = vadd.f32 0.0, %v2164
        %v2166 = vpop.f32.mrb[0].mxu0
        %v2167 = vadd.f32 0.0, %v2166
        %v2168 = vpop.f32.mrb[0].mxu0
        %v2169 = vadd.f32 0.0, %v2168
        %v2170 = vpop.f32.mrb[0].mxu0
        %v2171 = vadd.f32 0.0, %v2170
        %2172 = vdwg.mxu0
        %2173 = vmatprep.subr.bf16.mxu0 0
        %2174 = vmatpush1.bf16.xpose.msra.mxu0 %v1567
        %2175 = vmatprep.subr.bf16.mxu0 0
        %2176 = vmatpush1.bf16.xpose.msra.mxu0 %v1570
        %2177 = vmatprep.subr.bf16.mxu0 0
        %2178 = vmatpush1.bf16.xpose.msra.mxu0 %v1573
        %2179 = vmatprep.subr.bf16.mxu0 0
        %2180 = vmatpush1.bf16.xpose.msra.mxu0 %v1576
        %2181 = vmatprep.subr.bf16.mxu0 0
        %2182 = vmatpush1.bf16.xpose.msra.mxu0 %v1579
        %2183 = vmatprep.subr.bf16.mxu0 0
        %2184 = vmatpush1.bf16.xpose.msra.mxu0 %v1582
        %2185 = vmatprep.subr.bf16.mxu0 0
        %2186 = vmatpush1.bf16.xpose.msra.mxu0 %v1585
        %2187 = vmatprep.subr.bf16.mxu0 0
        %2188 = vmatpush1.bf16.xpose.msra.mxu0 %v1588
        %2189 = vmatprep.subr.bf16.mxu0 0
        %2190 = vmatpush1.bf16.xpose.msra.mxu0 %v1591
        %2191 = vmatprep.subr.bf16.mxu0 0
        %2192 = vmatpush1.bf16.xpose.msra.mxu0 %v1594
        %2193 = vmatprep.subr.bf16.mxu0 0
        %2194 = vmatpush1.bf16.xpose.msra.mxu0 %v1597
        %2195 = vmatprep.subr.bf16.mxu0 0
        %2196 = vmatpush1.bf16.xpose.msra.mxu0 %v1600
        %2197 = vmatprep.subr.bf16.mxu0 0
        %2198 = vmatpush1.bf16.xpose.msra.mxu0 %v1603
        %2199 = vmatprep.subr.bf16.mxu0 0
        %2200 = vmatpush1.bf16.xpose.msra.mxu0 %v1606
        %2201 = vmatprep.subr.bf16.mxu0 0
        %2202 = vmatpush1.bf16.xpose.msra.mxu0 %v1609
        %2203 = vmatprep.subr.bf16.mxu0 0
        %2204 = vmatpush1.bf16.xpose.msra.mxu0 %v1612
        %2205 = vmatprep.mubr.bf16.mxu0 0
        %2206 = vmatmul.mubr.bf16.gmra.mrb[0].mxu0 %v1219
        %v2207 = vpop.f32.mrb[0].mxu0
        %v2208 = vadd.f32 0.0, %v2207
        %v2209 = vpop.f32.mrb[0].mxu0
        %v2210 = vadd.f32 0.0, %v2209
        %v2211 = vpop.f32.mrb[0].mxu0
        %v2212 = vadd.f32 0.0, %v2211
        %v2213 = vpop.f32.mrb[0].mxu0
        %v2214 = vadd.f32 0.0, %v2213
        %2215 = vmatprep.mubr.bf16.mxu0 0
        %2216 = vmatmul.mubr.bf16.gmra.mrb[0].mxu0 %v1222
        %v2217 = vpop.f32.mrb[0].mxu0
        %v2218 = vadd.f32 0.0, %v2217
        %v2219 = vpop.f32.mrb[0].mxu0
        %v2220 = vadd.f32 0.0, %v2219
        %v2221 = vpop.f32.mrb[0].mxu0
        %v2222 = vadd.f32 0.0, %v2221
        %v2223 = vpop.f32.mrb[0].mxu0
        %v2224 = vadd.f32 0.0, %v2223
        %2225 = vmatprep.mubr.bf16.mxu0 0
        %2226 = vmatmul.mubr.bf16.gmra.mrb[0].mxu0 %v1225
        %v2227 = vpop.f32.mrb[0].mxu0
        %v2228 = vadd.f32 0.0, %v2227
        %v2229 = vpop.f32.mrb[0].mxu0
        %v2230 = vadd.f32 0.0, %v2229
        %v2231 = vpop.f32.mrb[0].mxu0
        %v2232 = vadd.f32 0.0, %v2231
        %v2233 = vpop.f32.mrb[0].mxu0
        %v2234 = vadd.f32 0.0, %v2233
        %2235 = vmatprep.mubr.bf16.mxu0 0
        %2236 = vmatmul.mubr.bf16.gmra.mrb[0].mxu0 %v1228
        %v2237 = vpop.f32.mrb[0].mxu0
        %v2238 = vadd.f32 0.0, %v2237
        %v2239 = vpop.f32.mrb[0].mxu0
        %v2240 = vadd.f32 0.0, %v2239
        %v2241 = vpop.f32.mrb[0].mxu0
        %v2242 = vadd.f32 0.0, %v2241
        %v2243 = vpop.f32.mrb[0].mxu0
        %v2244 = vadd.f32 0.0, %v2243
        %2245 = vdwg.mxu0
        %2246 = vmatprep.subr.bf16.mxu0 0
        %2247 = vmatpush1.bf16.xpose.msra.mxu0 %v1615
        %2248 = vmatprep.subr.bf16.mxu0 0
        %2249 = vmatpush1.bf16.xpose.msra.mxu0 %v1618
        %2250 = vmatprep.subr.bf16.mxu0 0
        %2251 = vmatpush1.bf16.xpose.msra.mxu0 %v1621
        %2252 = vmatprep.subr.bf16.mxu0 0
        %2253 = vmatpush1.bf16.xpose.msra.mxu0 %v1624
        %2254 = vmatprep.subr.bf16.mxu0 0
        %2255 = vmatpush1.bf16.xpose.msra.mxu0 %v1627
        %2256 = vmatprep.subr.bf16.mxu0 0
        %2257 = vmatpush1.bf16.xpose.msra.mxu0 %v1630
        %2258 = vmatprep.subr.bf16.mxu0 0
        %2259 = vmatpush1.bf16.xpose.msra.mxu0 %v1633
        %2260 = vmatprep.subr.bf16.mxu0 0
        %2261 = vmatpush1.bf16.xpose.msra.mxu0 %v1636
        %2262 = vmatprep.subr.bf16.mxu0 0
        %2263 = vmatpush1.bf16.xpose.msra.mxu0 %v1639
        %2264 = vmatprep.subr.bf16.mxu0 0
        %2265 = vmatpush1.bf16.xpose.msra.mxu0 %v1642
        %2266 = vmatprep.subr.bf16.mxu0 0
        %2267 = vmatpush1.bf16.xpose.msra.mxu0 %v1645
        %2268 = vmatprep.subr.bf16.mxu0 0
        %2269 = vmatpush1.bf16.xpose.msra.mxu0 %v1648
        %2270 = vmatprep.subr.bf16.mxu0 0
        %2271 = vmatpush1.bf16.xpose.msra.mxu0 %v1651
        %2272 = vmatprep.subr.bf16.mxu0 0
        %2273 = vmatpush1.bf16.xpose.msra.mxu0 %v1654
        %2274 = vmatprep.subr.bf16.mxu0 0
        %2275 = vmatpush1.bf16.xpose.msra.mxu0 %v1657
        %2276 = vmatprep.subr.bf16.mxu0 0
        %2277 = vmatpush1.bf16.xpose.msra.mxu0 %v1660
        %2278 = vmatprep.mubr.bf16.mxu0 0
        %2279 = vmatmul.mubr.bf16.gmra.mrb[0].mxu0 %v1219
        %v2280 = vpop.f32.mrb[0].mxu0
        %v2281 = vadd.f32 0.0, %v2280
        %v2282 = vpop.f32.mrb[0].mxu0
        %v2283 = vadd.f32 0.0, %v2282
        %v2284 = vpop.f32.mrb[0].mxu0
        %v2285 = vadd.f32 0.0, %v2284
        %v2286 = vpop.f32.mrb[0].mxu0
        %v2287 = vadd.f32 0.0, %v2286
        %2288 = vmatprep.mubr.bf16.mxu0 0
        %2289 = vmatmul.mubr.bf16.gmra.mrb[0].mxu0 %v1222
        %v2290 = vpop.f32.mrb[0].mxu0
        %v2291 = vadd.f32 0.0, %v2290
        %v2292 = vpop.f32.mrb[0].mxu0
        %v2293 = vadd.f32 0.0, %v2292
        %v2294 = vpop.f32.mrb[0].mxu0
        %v2295 = vadd.f32 0.0, %v2294
        %v2296 = vpop.f32.mrb[0].mxu0
        %v2297 = vadd.f32 0.0, %v2296
        %2298 = vmatprep.mubr.bf16.mxu0 0
        %2299 = vmatmul.mubr.bf16.gmra.mrb[0].mxu0 %v1225
        %v2300 = vpop.f32.mrb[0].mxu0
        %v2301 = vadd.f32 0.0, %v2300
        %v2302 = vpop.f32.mrb[0].mxu0
        %v2303 = vadd.f32 0.0, %v2302
        %v2304 = vpop.f32.mrb[0].mxu0
        %v2305 = vadd.f32 0.0, %v2304
        %v2306 = vpop.f32.mrb[0].mxu0
        %v2307 = vadd.f32 0.0, %v2306
        %2308 = vmatprep.mubr.bf16.mxu0 0
        %2309 = vmatmul.mubr.bf16.gmra.mrb[0].mxu0 %v1228
        %v2310 = vpop.f32.mrb[0].mxu0
        %v2311 = vadd.f32 0.0, %v2310
        %v2312 = vpop.f32.mrb[0].mxu0
        %v2313 = vadd.f32 0.0, %v2312
        %v2314 = vpop.f32.mrb[0].mxu0
        %v2315 = vadd.f32 0.0, %v2314
        %v2316 = vpop.f32.mrb[0].mxu0
        %v2317 = vadd.f32 0.0, %v2316
        %2318 = vdwg.mxu0
        %v2319 = vpack.c.bf16 %v1701, %v1697
        %v2320 = vpack.c.bf16 %v1703, %v1699
        %v2321 = vpack.c.bf16 %v1774, %v1770
        %v2322 = vpack.c.bf16 %v1776, %v1772
        %v2323 = vpack.c.bf16 %v1847, %v1843
        %v2324 = vpack.c.bf16 %v1849, %v1845
        %v2325 = vpack.c.bf16 %v1920, %v1916
        %v2326 = vpack.c.bf16 %v1922, %v1918
        %v2327 = vpack.c.bf16 %v1993, %v1989
        %v2328 = vpack.c.bf16 %v1995, %v1991
        %v2329 = vpack.c.bf16 %v2066, %v2062
        %v2330 = vpack.c.bf16 %v2068, %v2064
        %v2331 = vpack.c.bf16 %v2139, %v2135
        %v2332 = vpack.c.bf16 %v2141, %v2137
        %v2333 = vpack.c.bf16 %v2212, %v2208
        %v2334 = vpack.c.bf16 %v2214, %v2210
        %v2335 = vpack.c.bf16 %v2285, %v2281
        %v2336 = vpack.c.bf16 %v2287, %v2283
        %v2337 = vpack.c.bf16 %v1711, %v1707
        %v2338 = vpack.c.bf16 %v1713, %v1709
        %v2339 = vpack.c.bf16 %v1784, %v1780
        %v2340 = vpack.c.bf16 %v1786, %v1782
        %v2341 = vpack.c.bf16 %v1857, %v1853
        %v2342 = vpack.c.bf16 %v1859, %v1855
        %v2343 = vpack.c.bf16 %v1930, %v1926
        %v2344 = vpack.c.bf16 %v1932, %v1928
        %v2345 = vpack.c.bf16 %v2003, %v1999
        %v2346 = vpack.c.bf16 %v2005, %v2001
        %v2347 = vpack.c.bf16 %v2076, %v2072
        %v2348 = vpack.c.bf16 %v2078, %v2074
        %v2349 = vpack.c.bf16 %v2149, %v2145
        %v2350 = vpack.c.bf16 %v2151, %v2147
        %v2351 = vpack.c.bf16 %v2222, %v2218
        %v2352 = vpack.c.bf16 %v2224, %v2220
        %v2353 = vpack.c.bf16 %v2295, %v2291
        %v2354 = vpack.c.bf16 %v2297, %v2293
        %v2355 = vpack.c.bf16 %v1721, %v1717
        %v2356 = vpack.c.bf16 %v1723, %v1719
        %v2357 = vpack.c.bf16 %v1794, %v1790
        %v2358 = vpack.c.bf16 %v1796, %v1792
        %v2359 = vpack.c.bf16 %v1867, %v1863
        %v2360 = vpack.c.bf16 %v1869, %v1865
        %v2361 = vpack.c.bf16 %v1940, %v1936
        %v2362 = vpack.c.bf16 %v1942, %v1938
        %v2363 = vpack.c.bf16 %v2013, %v2009
        %v2364 = vpack.c.bf16 %v2015, %v2011
        %v2365 = vpack.c.bf16 %v2086, %v2082
        %v2366 = vpack.c.bf16 %v2088, %v2084
        %v2367 = vpack.c.bf16 %v2159, %v2155
        %v2368 = vpack.c.bf16 %v2161, %v2157
        %v2369 = vpack.c.bf16 %v2232, %v2228
        %v2370 = vpack.c.bf16 %v2234, %v2230
        %v2371 = vpack.c.bf16 %v2305, %v2301
        %v2372 = vpack.c.bf16 %v2307, %v2303
        %v2373 = vpack.c.bf16 %v1731, %v1727
        %v2374 = vpack.c.bf16 %v1733, %v1729
        %v2375 = vpack.c.bf16 %v1804, %v1800
        %v2376 = vpack.c.bf16 %v1806, %v1802
        %v2377 = vpack.c.bf16 %v1877, %v1873
        %v2378 = vpack.c.bf16 %v1879, %v1875
        %v2379 = vpack.c.bf16 %v1950, %v1946
        %v2380 = vpack.c.bf16 %v1952, %v1948
        %v2381 = vpack.c.bf16 %v2023, %v2019
        %v2382 = vpack.c.bf16 %v2025, %v2021
        %v2383 = vpack.c.bf16 %v2096, %v2092
        %v2384 = vpack.c.bf16 %v2098, %v2094
        %v2385 = vpack.c.bf16 %v2169, %v2165
        %v2386 = vpack.c.bf16 %v2171, %v2167
        %v2387 = vpack.c.bf16 %v2242, %v2238
        %v2388 = vpack.c.bf16 %v2244, %v2240
        %v2389 = vpack.c.bf16 %v2315, %v2311
        %v2390 = vpack.c.bf16 %v2317, %v2313
        %v2391 = vld [vmem:[%s2] sm:$0xff]
        %v2392 = vld [vmem:[%s2 + $0x8] sm:$0xff]
        %v2393 = vld [vmem:[%s2 + $0x10] sm:$0xf]
        %v2394 = vld [vmem:[%s2 + $0x14] sm:$0xff]
        %v2395 = vld [vmem:[%s2 + $0x1c] sm:$0xff]
        %v2396 = vld [vmem:[%s2 + $0x24] sm:$0xf]
        %v2397 = vld [vmem:[%s2 + $0x28] sm:$0xff]
        %v2398 = vld [vmem:[%s2 + $0x30] sm:$0xff]
        %v2399 = vld [vmem:[%s2 + $0x38] sm:$0xf]
        %v2400 = vld [vmem:[%s2 + $0x3c] sm:$0xff]
        %v2401 = vld [vmem:[%s2 + $0x44] sm:$0xff]
        %v2402 = vld [vmem:[%s2 + $0x4c] sm:$0xf]
        %v2403 = vld [vmem:[%s2 + $0x50] sm:$0xff]
        %v2404 = vld [vmem:[%s2 + $0x58] sm:$0xff]
        %v2405 = vld [vmem:[%s2 + $0x60] sm:$0xf]
        %v2406 = vld [vmem:[%s2 + $0x64] sm:$0xff]
        %v2407 = vld [vmem:[%s2 + $0x6c] sm:$0xff]
        %v2408 = vld [vmem:[%s2 + $0x74] sm:$0xf]
        %v2409 = vld [vmem:[%s2 + $0x78] sm:$0xff]
        %v2410 = vld [vmem:[%s2 + $0x80] sm:$0xff]
        %v2411 = vld [vmem:[%s2 + $0x88] sm:$0xf]
        %v2412 = vld [vmem:[%s2 + $0x8c] sm:$0xff]
        %v2413 = vld [vmem:[%s2 + $0x94] sm:$0xff]
        %v2414 = vld [vmem:[%s2 + $0x9c] sm:$0xf]
        %v2415 = vld [vmem:[%s3] sm:$0xff]
        %v2416 = vld [vmem:[%s3 + $0x8] sm:$0xff]
        %v2417 = vld [vmem:[%s3 + $0x10] sm:$0xff]
        %v2418 = vld [vmem:[%s3 + $0x18] sm:$0xff]
        %v2419 = vld [vmem:[%s3 + $0x20] sm:$0xff]
        %v2420 = vld [vmem:[%s3 + $0x28] sm:$0xff]
        %v2421 = vld [vmem:[%s3 + $0x30] sm:$0xff]
        %v2422 = vld [vmem:[%s3 + $0x38] sm:$0xff]
        %2424 = vset.pattern.permute.xlu0 0
        %2425 = vperm.xlu0 %2424, %v2415
        %v2426 = vpop.permute.xlu0 %2425
        %2429 = vset.pattern.permute.xlu0 0
        %2430 = vperm.xlu0 %2429, %v2416
        %v2431 = vpop.permute.xlu0 %2430
        %2434 = vset.pattern.permute.xlu0 0
        %2435 = vperm.xlu0 %2434, %v2417
        %v2436 = vpop.permute.xlu0 %2435
        %2439 = vset.pattern.permute.xlu0 0
        %2440 = vperm.xlu0 %2439, %v2418
        %v2441 = vpop.permute.xlu0 %2440
        %2444 = vset.pattern.permute.xlu0 0
        %2445 = vperm.xlu0 %2444, %v2419
        %v2446 = vpop.permute.xlu0 %2445
        %2449 = vset.pattern.permute.xlu0 0
        %2450 = vperm.xlu0 %2449, %v2420
        %v2451 = vpop.permute.xlu0 %2450
        %2454 = vset.pattern.permute.xlu0 0
        %2455 = vperm.xlu0 %2454, %v2421
        %v2456 = vpop.permute.xlu0 %2455
        %2459 = vset.pattern.permute.xlu0 0
        %2460 = vperm.xlu0 %2459, %v2422
        %v2461 = vpop.permute.xlu0 %2460
        %v2487 = vunpack.c.l.b16 %v2391
        %v2488 = vunpack.c.h.b16 %v2391
        %v2489 = vunpack.c.l.b16 %v2392
        %v2490 = vunpack.c.h.b16 %v2392
        %v2491 = vunpack.c.l.b16 %v2393
        %v2492 = vunpack.c.l.b16 %v2394
        %v2493 = vunpack.c.h.b16 %v2394
        %v2494 = vunpack.c.l.b16 %v2395
        %v2495 = vunpack.c.h.b16 %v2395
        %v2496 = vunpack.c.l.b16 %v2396
        %v2497 = vunpack.c.l.b16 %v2397
        %v2498 = vunpack.c.h.b16 %v2397
        %v2499 = vunpack.c.l.b16 %v2398
        %v2500 = vunpack.c.h.b16 %v2398
        %v2501 = vunpack.c.l.b16 %v2399
        %v2502 = vunpack.c.l.b16 %v2400
        %v2503 = vunpack.c.h.b16 %v2400
        %v2504 = vunpack.c.l.b16 %v2401
        %v2505 = vunpack.c.h.b16 %v2401
        %v2506 = vunpack.c.l.b16 %v2402
        %v2507 = vunpack.c.l.b16 %v2403
        %v2508 = vunpack.c.h.b16 %v2403
        %v2509 = vunpack.c.l.b16 %v2404
        %v2510 = vunpack.c.h.b16 %v2404
        %v2511 = vunpack.c.l.b16 %v2405
        %v2512 = vunpack.c.l.b16 %v2406
        %v2513 = vunpack.c.h.b16 %v2406
        %v2514 = vunpack.c.l.b16 %v2407
        %v2515 = vunpack.c.h.b16 %v2407
        %v2516 = vunpack.c.l.b16 %v2408
        %v2517 = vunpack.c.l.b16 %v2409
        %v2518 = vunpack.c.h.b16 %v2409
        %v2519 = vunpack.c.l.b16 %v2410
        %v2520 = vunpack.c.h.b16 %v2410
        %v2521 = vunpack.c.l.b16 %v2411
        %v2522 = vunpack.c.l.b16 %v2412
        %v2523 = vunpack.c.h.b16 %v2412
        %v2524 = vunpack.c.l.b16 %v2413
        %v2525 = vunpack.c.h.b16 %v2413
        %v2526 = vunpack.c.l.b16 %v2414
        %v2527 = vpack.c.b16 %v2492, %v2487
        %v2528 = vpack.c.b16 %v2493, %v2488
        %v2529 = vpack.c.b16 %v2494, %v2489
        %v2530 = vpack.c.b16 %v2495, %v2490
        %v2531 = vpack.c.b16 %v2496, %v2491
        %v2532 = vpack.c.b16 %v2502, %v2497
        %v2533 = vpack.c.b16 %v2503, %v2498
        %v2534 = vpack.c.b16 %v2504, %v2499
        %v2535 = vpack.c.b16 %v2505, %v2500
        %v2536 = vpack.c.b16 %v2506, %v2501
        %v2537 = vpack.c.b16 %v2512, %v2507
        %v2538 = vpack.c.b16 %v2513, %v2508
        %v2539 = vpack.c.b16 %v2514, %v2509
        %v2540 = vpack.c.b16 %v2515, %v2510
        %v2541 = vpack.c.b16 %v2516, %v2511
        %v2542 = vpack.c.b16 %v2522, %v2517
        %v2543 = vpack.c.b16 %v2523, %v2518
        %v2544 = vpack.c.b16 %v2524, %v2519
        %v2545 = vpack.c.b16 %v2525, %v2520
        %v2546 = vpack.c.b16 %v2526, %v2521
        %v2564 = vsel %vm1217, %v2531, 0
        %v2567 = vsel %vm1217, %v2536, 0
        %v2570 = vsel %vm1217, %v2541, 0
        %v2573 = vsel %vm1217, %v2546, 0
        %2575 = vmatprep.subr.bf16.mxu0 %v2320
        %2576 = vmatpush1.bf16.msra.mxu0 %v2319
        %2577 = vmatprep.subr.bf16.mxu0 %v2338
        %2578 = vmatpush1.bf16.msra.mxu0 %v2337
        %2579 = vmatprep.subr.bf16.mxu0 %v2356
        %2580 = vmatpush1.bf16.msra.mxu0 %v2355
        %2581 = vmatprep.subr.bf16.mxu0 %v2374
        %2582 = vmatpush1.bf16.msra.mxu0 %v2373
        %2583 = vmatprep.subr.bf16.mxu0 %v2322
        %2584 = vmatpush1.bf16.msra.mxu0 %v2321
        %2585 = vmatprep.subr.bf16.mxu0 %v2340
        %2586 = vmatpush1.bf16.msra.mxu0 %v2339
        %2587 = vmatprep.subr.bf16.mxu0 %v2358
        %2588 = vmatpush1.bf16.msra.mxu0 %v2357
        %2589 = vmatprep.subr.bf16.mxu0 %v2376
        %2590 = vmatpush1.bf16.msra.mxu0 %v2375
        %2591 = vmatprep.subr.bf16.mxu0 %v2324
        %2592 = vmatpush1.bf16.msra.mxu0 %v2323
        %2593 = vmatprep.subr.bf16.mxu0 %v2342
        %2594 = vmatpush1.bf16.msra.mxu0 %v2341
        %2595 = vmatprep.subr.bf16.mxu0 %v2360
        %2596 = vmatpush1.bf16.msra.mxu0 %v2359
        %2597 = vmatprep.subr.bf16.mxu0 %v2378
        %2598 = vmatpush1.bf16.msra.mxu0 %v2377
        %2599 = vmatprep.subr.bf16.mxu0 %v2326
        %2600 = vmatpush1.bf16.msra.mxu0 %v2325
        %2601 = vmatprep.subr.bf16.mxu0 %v2344
        %2602 = vmatpush1.bf16.msra.mxu0 %v2343
        %2603 = vmatprep.subr.bf16.mxu0 %v2362
        %2604 = vmatpush1.bf16.msra.mxu0 %v2361
        %2605 = vmatprep.subr.bf16.mxu0 %v2380
        %2606 = vmatpush1.bf16.msra.mxu0 %v2379
        %2607 = vmatprep.mubr.bf16.mxu0 %v2528
        %2608 = vmatmul.mubr.bf16.gmra.mrb[0].mxu0 %v2527
        %v2609 = vpop.f32.mrb[0].mxu0
        %v2610 = vadd.f32 %v2426, %v2609
        %v2611 = vpop.f32.mrb[0].mxu0
        %v2612 = vadd.f32 %v2426, %v2611
        %v2613 = vpop.f32.mrb[0].mxu0
        %v2614 = vadd.f32 %v2431, %v2613
        %v2615 = vpop.f32.mrb[0].mxu0
        %v2616 = vadd.f32 %v2431, %v2615
        %2617 = vmatprep.mubr.bf16.mxu0 %v2533
        %2618 = vmatmul.mubr.bf16.gmra.mrb[0].mxu0 %v2532
        %v2619 = vpop.f32.mrb[0].mxu0
        %v2620 = vadd.f32 %v2436, %v2619
        %v2621 = vpop.f32.mrb[0].mxu0
        %v2622 = vadd.f32 %v2436, %v2621
        %v2623 = vpop.f32.mrb[0].mxu0
        %v2624 = vadd.f32 %v2441, %v2623
        %v2625 = vpop.f32.mrb[0].mxu0
        %v2626 = vadd.f32 %v2441, %v2625
        %2627 = vmatprep.mubr.bf16.mxu0 %v2538
        %2628 = vmatmul.mubr.bf16.gmra.mrb[0].mxu0 %v2537
        %v2629 = vpop.f32.mrb[0].mxu0
        %v2630 = vadd.f32 %v2446, %v2629
        %v2631 = vpop.f32.mrb[0].mxu0
        %v2632 = vadd.f32 %v2446, %v2631
        %v2633 = vpop.f32.mrb[0].mxu0
        %v2634 = vadd.f32 %v2451, %v2633
        %v2635 = vpop.f32.mrb[0].mxu0
        %v2636 = vadd.f32 %v2451, %v2635
        %2637 = vmatprep.mubr.bf16.mxu0 %v2543
        %2638 = vmatmul.mubr.bf16.gmra.mrb[0].mxu0 %v2542
        %v2639 = vpop.f32.mrb[0].mxu0
        %v2640 = vadd.f32 %v2456, %v2639
        %v2641 = vpop.f32.mrb[0].mxu0
        %v2642 = vadd.f32 %v2456, %v2641
        %v2643 = vpop.f32.mrb[0].mxu0
        %v2644 = vadd.f32 %v2461, %v2643
        %v2645 = vpop.f32.mrb[0].mxu0
        %v2646 = vadd.f32 %v2461, %v2645
        %2647 = vdwg.mxu0
        %2648 = vmatprep.subr.bf16.mxu0 %v2328
        %2649 = vmatpush1.bf16.msra.mxu0 %v2327
        %2650 = vmatprep.subr.bf16.mxu0 %v2346
        %2651 = vmatpush1.bf16.msra.mxu0 %v2345
        %2652 = vmatprep.subr.bf16.mxu0 %v2364
        %2653 = vmatpush1.bf16.msra.mxu0 %v2363
        %2654 = vmatprep.subr.bf16.mxu0 %v2382
        %2655 = vmatpush1.bf16.msra.mxu0 %v2381
        %2656 = vmatprep.subr.bf16.mxu0 %v2330
        %2657 = vmatpush1.bf16.msra.mxu0 %v2329
        %2658 = vmatprep.subr.bf16.mxu0 %v2348
        %2659 = vmatpush1.bf16.msra.mxu0 %v2347
        %2660 = vmatprep.subr.bf16.mxu0 %v2366
        %2661 = vmatpush1.bf16.msra.mxu0 %v2365
        %2662 = vmatprep.subr.bf16.mxu0 %v2384
        %2663 = vmatpush1.bf16.msra.mxu0 %v2383
        %2664 = vmatprep.subr.bf16.mxu0 %v2332
        %2665 = vmatpush1.bf16.msra.mxu0 %v2331
        %2666 = vmatprep.subr.bf16.mxu0 %v2350
        %2667 = vmatpush1.bf16.msra.mxu0 %v2349
        %2668 = vmatprep.subr.bf16.mxu0 %v2368
        %2669 = vmatpush1.bf16.msra.mxu0 %v2367
        %2670 = vmatprep.subr.bf16.mxu0 %v2386
        %2671 = vmatpush1.bf16.msra.mxu0 %v2385
        %2672 = vmatprep.subr.bf16.mxu0 %v2334
        %2673 = vmatpush1.bf16.msra.mxu0 %v2333
        %2674 = vmatprep.subr.bf16.mxu0 %v2352
        %2675 = vmatpush1.bf16.msra.mxu0 %v2351
        %2676 = vmatprep.subr.bf16.mxu0 %v2370
        %2677 = vmatpush1.bf16.msra.mxu0 %v2369
        %2678 = vmatprep.subr.bf16.mxu0 %v2388
        %2679 = vmatpush1.bf16.msra.mxu0 %v2387
        %2680 = vmatprep.mubr.bf16.mxu0 %v2530
        %2681 = vmatmul.mubr.bf16.gmra.mrb[0].mxu0 %v2529
        %v2682 = vpop.f32.mrb[0].mxu0
        %v2683 = vadd.f32 %v2610, %v2682
        %v2684 = vpop.f32.mrb[0].mxu0
        %v2685 = vadd.f32 %v2612, %v2684
        %v2686 = vpop.f32.mrb[0].mxu0
        %v2687 = vadd.f32 %v2614, %v2686
        %v2688 = vpop.f32.mrb[0].mxu0
        %v2689 = vadd.f32 %v2616, %v2688
        %2690 = vmatprep.mubr.bf16.mxu0 %v2535
        %2691 = vmatmul.mubr.bf16.gmra.mrb[0].mxu0 %v2534
        %v2692 = vpop.f32.mrb[0].mxu0
        %v2693 = vadd.f32 %v2620, %v2692
        %v2694 = vpop.f32.mrb[0].mxu0
        %v2695 = vadd.f32 %v2622, %v2694
        %v2696 = vpop.f32.mrb[0].mxu0
        %v2697 = vadd.f32 %v2624, %v2696
        %v2698 = vpop.f32.mrb[0].mxu0
        %v2699 = vadd.f32 %v2626, %v2698
        %2700 = vmatprep.mubr.bf16.mxu0 %v2540
        %2701 = vmatmul.mubr.bf16.gmra.mrb[0].mxu0 %v2539
        %v2702 = vpop.f32.mrb[0].mxu0
        %v2703 = vadd.f32 %v2630, %v2702
        %v2704 = vpop.f32.mrb[0].mxu0
        %v2705 = vadd.f32 %v2632, %v2704
        %v2706 = vpop.f32.mrb[0].mxu0
        %v2707 = vadd.f32 %v2634, %v2706
        %v2708 = vpop.f32.mrb[0].mxu0
        %v2709 = vadd.f32 %v2636, %v2708
        %2710 = vmatprep.mubr.bf16.mxu0 %v2545
        %2711 = vmatmul.mubr.bf16.gmra.mrb[0].mxu0 %v2544
        %v2712 = vpop.f32.mrb[0].mxu0
        %v2713 = vadd.f32 %v2640, %v2712
        %v2714 = vpop.f32.mrb[0].mxu0
        %v2715 = vadd.f32 %v2642, %v2714
        %v2716 = vpop.f32.mrb[0].mxu0
        %v2717 = vadd.f32 %v2644, %v2716
        %v2718 = vpop.f32.mrb[0].mxu0
        %v2719 = vadd.f32 %v2646, %v2718
        %2720 = vdwg.mxu0
        %2721 = vmatprep.subr.bf16.mxu0 %v2336
        %2722 = vmatpush1.bf16.msra.mxu0 %v2335
        %2723 = vmatprep.subr.bf16.mxu0 %v2354
        %2724 = vmatpush1.bf16.msra.mxu0 %v2353
        %2725 = vmatprep.subr.bf16.mxu0 %v2372
        %2726 = vmatpush1.bf16.msra.mxu0 %v2371
        %2727 = vmatprep.subr.bf16.mxu0 %v2390
        %2728 = vmatpush1.bf16.msra.mxu0 %v2389
        %2729 = vmatprep.subr.bf16.mxu0 0
        %2730 = vmatpush1.bf16.msra.mxu0 0
        %2731 = vmatprep.subr.bf16.mxu0 0
        %2732 = vmatpush1.bf16.msra.mxu0 0
        %2733 = vmatprep.subr.bf16.mxu0 0
        %2734 = vmatpush1.bf16.msra.mxu0 0
        %2735 = vmatprep.subr.bf16.mxu0 0
        %2736 = vmatpush1.bf16.msra.mxu0 0
        %2737 = vmatprep.subr.bf16.mxu0 0
        %2738 = vmatpush1.bf16.msra.mxu0 0
        %2739 = vmatprep.subr.bf16.mxu0 0
        %2740 = vmatpush1.bf16.msra.mxu0 0
        %2741 = vmatprep.subr.bf16.mxu0 0
        %2742 = vmatpush1.bf16.msra.mxu0 0
        %2743 = vmatprep.subr.bf16.mxu0 0
        %2744 = vmatpush1.bf16.msra.mxu0 0
        %2745 = vmatprep.subr.bf16.mxu0 0
        %2746 = vmatpush1.bf16.msra.mxu0 0
        %2747 = vmatprep.subr.bf16.mxu0 0
        %2748 = vmatpush1.bf16.msra.mxu0 0
        %2749 = vmatprep.subr.bf16.mxu0 0
        %2750 = vmatpush1.bf16.msra.mxu0 0
        %2751 = vmatprep.subr.bf16.mxu0 0
        %2752 = vmatpush1.bf16.msra.mxu0 0
        %2753 = vmatprep.mubr.bf16.mxu0 0
        %2754 = vmatmul.mubr.bf16.gmra.mrb[0].mxu0 %v2564
        %v2755 = vpop.f32.mrb[0].mxu0
        %v2756 = vadd.f32 %v2683, %v2755
        %v2757 = vpop.f32.mrb[0].mxu0
        %v2758 = vadd.f32 %v2685, %v2757
        %v2759 = vpop.f32.mrb[0].mxu0
        %v2760 = vadd.f32 %v2687, %v2759
        %v2761 = vpop.f32.mrb[0].mxu0
        %v2762 = vadd.f32 %v2689, %v2761
        %2763 = vmatprep.mubr.bf16.mxu0 0
        %2764 = vmatmul.mubr.bf16.gmra.mrb[0].mxu0 %v2567
        %v2765 = vpop.f32.mrb[0].mxu0
        %v2766 = vadd.f32 %v2693, %v2765
        %v2767 = vpop.f32.mrb[0].mxu0
        %v2768 = vadd.f32 %v2695, %v2767
        %v2769 = vpop.f32.mrb[0].mxu0
        %v2770 = vadd.f32 %v2697, %v2769
        %v2771 = vpop.f32.mrb[0].mxu0
        %v2772 = vadd.f32 %v2699, %v2771
        %2773 = vmatprep.mubr.bf16.mxu0 0
        %2774 = vmatmul.mubr.bf16.gmra.mrb[0].mxu0 %v2570
        %v2775 = vpop.f32.mrb[0].mxu0
        %v2776 = vadd.f32 %v2703, %v2775
        %v2777 = vpop.f32.mrb[0].mxu0
        %v2778 = vadd.f32 %v2705, %v2777
        %v2779 = vpop.f32.mrb[0].mxu0
        %v2780 = vadd.f32 %v2707, %v2779
        %v2781 = vpop.f32.mrb[0].mxu0
        %v2782 = vadd.f32 %v2709, %v2781
        %2783 = vmatprep.mubr.bf16.mxu0 0
        %2784 = vmatmul.mubr.bf16.gmra.mrb[0].mxu0 %v2573
        %v2785 = vpop.f32.mrb[0].mxu0
        %v2786 = vadd.f32 %v2713, %v2785
        %v2787 = vpop.f32.mrb[0].mxu0
        %v2788 = vadd.f32 %v2715, %v2787
        %v2789 = vpop.f32.mrb[0].mxu0
        %v2790 = vadd.f32 %v2717, %v2789
        %v2791 = vpop.f32.mrb[0].mxu0
        %v2792 = vadd.f32 %v2719, %v2791
        %2793 = vdwg.mxu0
        %2794 = vst [vmem:[%s190] sm:$0xff] %v2756
        %2795 = vst [vmem:[%s190 + $0x8] sm:$0xff] %v2758
        %2796 = vst [vmem:[%s190 + $0x10] sm:$0xff] %v2760
        %2797 = vst [vmem:[%s190 + $0x18] sm:$0xff] %v2762
        %2798 = vst [vmem:[%s190 + $0x20] sm:$0xff] %v2766
        %2799 = vst [vmem:[%s190 + $0x28] sm:$0xff] %v2768
        %2800 = vst [vmem:[%s190 + $0x30] sm:$0xff] %v2770
        %2801 = vst [vmem:[%s190 + $0x38] sm:$0xff] %v2772
        %2802 = vst [vmem:[%s190 + $0x40] sm:$0xff] %v2776
        %2803 = vst [vmem:[%s190 + $0x48] sm:$0xff] %v2778
        %2804 = vst [vmem:[%s190 + $0x50] sm:$0xff] %v2780
        %2805 = vst [vmem:[%s190 + $0x58] sm:$0xff] %v2782
        %2806 = vst [vmem:[%s190 + $0x60] sm:$0xff] %v2786
        %2807 = vst [vmem:[%s190 + $0x68] sm:$0xff] %v2788
        %2808 = vst [vmem:[%s190 + $0x70] sm:$0xff] %v2790
        %2809 = vst [vmem:[%s190 + $0x78] sm:$0xff] %v2792
        %s2810 = sand.u32 %s115, 1
        %s2811 = scalar_lea.sflag [#allocation3], %s2810
        %s2812 = sand.u32 %s115, 1
        %s2813 = smul.addr %s2812, 128
        %s2814 = scalar_lea.vmem [#allocation2], %s2813
        // Predicated region
        $region37: #{tpu_custom_call.1} parent=35 // pred_check
          %p2815 = pneg %p125
        $region38: #{tpu_custom_call.1} parent=35 // pred_check_branch
          %2817 = sbr.rel (%p2815) target = $region40
        $region39: #{tpu_custom_call.1} parent=35 // pred_region
          %s2819 = ssub.s32 2048, 2048
          %2820 = vsyncadd %s2811, %s2819
          %s2821 = smul.addr %s18, 16
          %s2822 = smul.addr %s2821, 128
          %s2823 = scalar_lea.hbm %s4, %s2822
          %s2824 = sshll.u32 %s2814, 4
          %s2825 = int_to_ptr.vmem [resolvable:$true] %s2824
          %2830 = dma.vmem_to_hbm [thread:$0]  %s2825, 2048, %s2823, %s2811, 256, 256, 16
        $region40: #{tpu_custom_call.1} parent=35 // pred_fallthru
          _
      $region36: #{tpu_custom_call.1} parent=5 // pred_fallthru
        _
      %p2831 = scmp.le.s32.totalorder 2, %s13
      // Predicated region
      $region41: #{tpu_custom_call.1} parent=5 // pred_check
        %p2832 = pneg %p2831
      $region42: #{tpu_custom_call.1} parent=5 // pred_check_branch
        %2834 = sbr.rel (%p2832) target = $region44
      $region43: #{tpu_custom_call.1} parent=5 // pred_region
        %s2835 = ssub.s32 %s13, 2
        // Predicated region
        $region45: #{tpu_custom_call.1} parent=43 // pred_check
          %p2836 = pneg %p131
        $region46: #{tpu_custom_call.1} parent=43 // pred_check_branch
          %2838 = sbr.rel (%p2836) target = $region48
        $region47: #{tpu_custom_call.1} parent=43 // pred_region
          %s2839 = sand.u32 %s116, 1
          %s2840 = scalar_lea.sflag [#allocation3], %s2839
          %s2841 = sand.u32 %s116, 1
          %s2842 = smul.addr %s2841, 128
          %s2843 = scalar_lea.vmem [#allocation2], %s2842
          %2844 = dma.done %s2840, 2048
        $region48: #{tpu_custom_call.1} parent=43 // pred_fallthru
          _
      $region44: #{tpu_custom_call.1} parent=5 // pred_fallthru
        _
    $region6: #{tpu_custom_call.1} parent=1 // loop_footer
      %s17 = sadd.s32 1, %s13
    $region7: #{tpu_custom_call.1} parent=1 // loop_footer_branch
      %12 = sbr.rel target = $region3
    $region8: #{tpu_custom_call.1} parent=1 // loop_exit
      _
    %2845 = vsyncpa [#allocation3], 1
    %s2846 = scalar_lea.sflag [#allocation3], 1
    %2847 = vsyncpa %s2846, 1

</llo_original>
